<compile_context>
chip_gen: v7x
topology: tpu7x:2x2x1
jax: 0.10.0
libtpu: 0.0.40
codegen_flags: <defaults>
</compile_context>

<pallas_src>
import functools

import jax
import jax.numpy as jnp
from jax import lax
from jax.experimental import pallas as pl
from jax.experimental.pallas import tpu as pltpu


def _backward_warp_kernel(tbl_ref, inp_ref, pos_ref, out_ref, acc_ref,
                          *, H, W, Kc, NJ, NK):
    """Grid (b, j, k): b = batch, j = dest-pixel tile, k = source-pixel chunk.

    tbl_ref: SMEM (B*NJ*2,) int32 -- per (b, j): [lo_chunk, hi_chunk]
    inp_ref: (1, C, Kc)  source-pixel chunk (index_map clamps k to [lo, hi])
    pos_ref: (1, 2, T)   absolute sample positions of this dest tile
    out_ref: (1, C, T)
    acc_ref: (C, T) f32  VMEM accumulator, resident across the k axis
    """
    T = pos_ref.shape[2]
    b = pl.program_id(0)
    j = pl.program_id(1)
    k = pl.program_id(2)

    base = (b * NJ + j) * 2
    lo = tbl_ref[base]
    hi = tbl_ref[base + 1]

    @pl.when(k == 0)
    def _():
        acc_ref[...] = jnp.zeros_like(acc_ref)

    # Per-dest-pixel bilinear corner weights -- (1, T) VPU arrays, cheap.
    ix = pos_ref[0, 0:1, :]                   # absolute sample x (pixels)
    iy = pos_ref[0, 1:2, :]                   # absolute sample y (pixels)
    x0f = jnp.floor(ix)
    y0f = jnp.floor(iy)
    wx1 = ix - x0f
    wx0 = 1.0 - wx1
    wy1 = iy - y0f
    wy0 = 1.0 - wy1
    x0 = x0f.astype(jnp.int32)
    y0 = y0f.astype(jnp.int32)
    x1 = x0 + 1
    y1 = y0 + 1

    # zeros padding: out-of-bounds corners contribute nothing.
    inb_x0 = jnp.logical_and(x0 >= 0, x0 < W)
    inb_x1 = jnp.logical_and(x1 >= 0, x1 < W)
    inb_y0 = jnp.logical_and(y0 >= 0, y0 < H)
    inb_y1 = jnp.logical_and(y1 >= 0, y1 < H)

    m00 = jnp.where(jnp.logical_and(inb_x0, inb_y0), wx0 * wy0, 0.0)  # (1, T)
    m10 = jnp.where(jnp.logical_and(inb_x1, inb_y0), wx1 * wy0, 0.0)
    m01 = jnp.where(jnp.logical_and(inb_x0, inb_y1), wx0 * wy1, 0.0)
    m11 = jnp.where(jnp.logical_and(inb_x1, inb_y1), wx1 * wy1, 0.0)
    idx00 = y0 * W + x0                                               # (1, T)

    # Only chunks inside this dest tile's sample range contribute; out-of-range
    # chunks cost one near-empty grid step instead of an O(Kc*T) build.
    @pl.when(jnp.logical_and(k >= lo, k <= hi))
    def _():
        # Chunk-local selection matrix S^T (Kc source rows x T dest cols).
        # Corner flat offsets from idx00 are {0, 1, W, W+1}; build as a SUM of
        # four independent selects (no serial select chain, a single (Kc, T)
        # materialized matmul operand).  Weights never collide even for W == 1
        # because the in-bounds masks already zero conflicting corners.
        row = lax.broadcasted_iota(jnp.int32, (Kc, T), 0)
        d = row - (idx00 - k * Kc)                                    # (Kc, T)
        st = (jnp.where(d == 0, m00, 0.0)
              + jnp.where(d == 1, m10, 0.0)
              + jnp.where(d == W, m01, 0.0)
              + jnp.where(d == W + 1, m11, 0.0))
        # Bilinear gather of all C channels: (C, Kc) @ (Kc, T) on the MXU.
        acc_ref[...] += jnp.dot(inp_ref[0], st,
                                preferred_element_type=jnp.float32)

    @pl.when(k == NK - 1)
    def _():
        # Warped ones-channel == sum of in-bounds corner weights; binarize.
        mask = jnp.where(m00 + m10 + m01 + m11 > 0.999, 1.0, 0.0)     # (1, T)
        out_ref[0] = acc_ref[...] * mask


def _pick_tiles(HW, C, budget, tile_t=None, chunk_k=None):
    """Largest lane-dense (T, Kc) dividing HW whose working set fits `budget`."""
    def vmem_need(T, Kc):
        return (4 * Kc * T * 4        # S^T chunk + live (Kc, T) temporaries
                + C * T * 4           # accumulator scratch
                + 2 * C * Kc * 4      # double-buffered input chunk
                + 2 * 2 * T * 4       # double-buffered pos tile
                + 2 * C * T * 4)      # double-buffered output tile

    if tile_t is not None and chunk_k is not None:
        assert HW % tile_t == 0 and HW % chunk_k == 0
        return tile_t, chunk_k, vmem_need(tile_t, chunk_k)

    t_cands = [t for t in (2048, 1024, 512, 256, 128) if t <= HW and HW % t == 0]
    if not t_cands:
        t_cands = [HW]   # TODO(synk): pad odd HW to a multiple of 128 instead
    k_cands = [k for k in (4096, 2048, 1024, 512, 256, 128) if k <= HW and HW % k == 0]
    if not k_cands:
        k_cands = [HW]
    for T in t_cands:            # prefer largest dest tile (lane-dense stores,
        for Kc in k_cands:       # fewer grid steps), then largest source chunk
            need = vmem_need(T, Kc)
            if need <= budget:
                return T, Kc, need
    T, Kc = t_cands[-1], k_cands[-1]
    return T, Kc, vmem_need(T, Kc)


def backward_warp(tensor_input, tensor_flow, *, tile_t=None, chunk_k=None):
    """tensor_input: (B, C, H, W) NCHW ; tensor_flow: (B, 2, H, W) in pixels."""
    B, C, H, W = tensor_input.shape
    assert tensor_flow.shape == (B, 2, H, W)
    HW = H * W

    inp_flat = tensor_input.astype(jnp.float32).reshape(B, C, HW)

    # Absolute sample positions: base pixel coords + flow (the module's flow
    # normalization cancels with align_corners=True denormalization).
    xb = jnp.arange(W, dtype=jnp.float32)[None, None, :]
    yb = jnp.arange(H, dtype=jnp.float32)[None, :, None]
    flow = tensor_flow.astype(jnp.float32)
    ix = (xb + flow[:, 0]).reshape(B, HW)
    iy = (yb + flow[:, 1]).reshape(B, HW)
    pos = jnp.stack([ix, iy], axis=1)                     # (B, 2, HW)

    # ---- generation-aware VMEM budget & tile selection ----------------------
    phys = None
    try:
        phys = getattr(pltpu.get_tpu_info(), "vmem_capacity_bytes", None)
    except Exception:
        phys = None
    if not phys:
        phys = 64 << 20                                   # conservative (v7x)
    budget = min(int(phys * 0.72), 100 << 20)             # ~46 MiB v7x, ~92 MiB v5e/v6e

    T, Kc, need = _pick_tiles(HW, C, budget, tile_t, chunk_k)
    NJ = HW // T
    NK = HW // Kc
    # Never set the limit below the computed need -- tiles already shrank to fit.
    vmem_limit = int(max(min(max(2 * need, 16 << 20), budget), need))

    # ---- scalar-prefetch table: per (b, dest-tile) source-chunk range --------
    x0 = jnp.floor(ix).astype(jnp.int32)
    y0 = jnp.floor(iy).astype(jnp.int32)
    idx00 = y0 * W + x0
    lo_idx = jnp.clip(idx00, 0, HW - 1)                   # covers all in-bounds
    hi_idx = jnp.clip(idx00 + W + 1, 0, HW - 1)           # corners of each pixel
    lo_chunk = jnp.min(lo_idx.reshape(B, NJ, T), axis=2) // Kc
    hi_chunk = jnp.max(hi_idx.reshape(B, NJ, T), axis=2) // Kc
    tbl = jnp.stack([lo_chunk, hi_chunk], axis=2).astype(jnp.int32).reshape(-1)

    kernel = functools.partial(_backward_warp_kernel,
                               H=H, W=W, Kc=Kc, NJ=NJ, NK=NK)

    def inp_index_map(b, j, k, tbl_ref):
        base = (b * NJ + j) * 2
        lo = tbl_ref[base]
        hi = tbl_ref[base + 1]
        kk = jnp.minimum(jnp.maximum(k, lo), hi)   # clamp: no fetch outside range
        return (b, 0, kk)

    out = pl.pallas_call(
        kernel,
        out_shape=jax.ShapeDtypeStruct((B, C, HW), jnp.float32),
        grid_spec=pltpu.PrefetchScalarGridSpec(
            num_scalar_prefetch=1,
            grid=(B, NJ, NK),
            in_specs=[
                pl.BlockSpec((1, C, Kc), inp_index_map),
                pl.BlockSpec((1, 2, T), lambda b, j, k, tbl: (b, 0, j)),
            ],
            out_specs=pl.BlockSpec((1, C, T), lambda b, j, k, tbl: (b, 0, j)),
            scratch_shapes=[pltpu.VMEM((C, T), jnp.float32)],
        ),
        compiler_params=pltpu.CompilerParams(
            dimension_semantics=("parallel", "parallel", "arbitrary"),
            vmem_limit_bytes=vmem_limit),
    )(tbl, inp_flat, pos)
    return out.reshape(B, C, H, W)


def backward_warp_ref(inp, flow):
    """Pure-JAX reference (same semantics as the PyTorch module)."""
    B, C, H, W = inp.shape
    inp_aug = jnp.concatenate([inp, jnp.ones((B, 1, H, W), inp.dtype)], axis=1)
    flat = inp_aug.reshape(B, C + 1, H * W)
    xb = jnp.arange(W, dtype=jnp.float32)[None, None, :]
    yb = jnp.arange(H, dtype=jnp.float32)[None, :, None]
    ix = xb + flow[:, 0]
    iy = yb + flow[:, 1]
    x0 = jnp.floor(ix)
    y0 = jnp.floor(iy)
    wx1 = ix - x0
    wx0 = 1.0 - wx1
    wy1 = iy - y0
    wy0 = 1.0 - wy1

    def gather(xc, yc, wc):
        inb = ((xc >= 0) & (xc < W) & (yc >= 0) & (yc < H)).astype(jnp.float32)
        xcc = jnp.clip(xc, 0, W - 1).astype(jnp.int32)
        ycc = jnp.clip(yc, 0, H - 1).astype(jnp.int32)
        idx = (ycc * W + xcc).reshape(B, 1, H * W)
        g = jnp.take_along_axis(flat, jnp.broadcast_to(idx, flat.shape), axis=2)
        return g * (wc * inb).reshape(B, 1, H * W)

    out = (gather(x0, y0, wx0 * wy0) + gather(x0 + 1, y0, wx1 * wy0)
           + gather(x0, y0 + 1, wx0 * wy1) + gather(x0 + 1, y0 + 1, wx1 * wy1))
    out = out.reshape(B, C + 1, H, W)
    mask = jnp.where(out[:, C:C + 1] > 0.999, 1.0, 0.0)
    return out[:, :C] * mask


if __name__ == "__main__":
    key = jax.random.PRNGKey(0)
    k1, k2, k3, k4 = jax.random.split(key, 4)

    # Test 1: module-like small shapes; single dest tile / single source chunk.
    B, C, H, W = 2, 4, 16, 16
    x = jax.random.normal(k1, (B, C, H, W), jnp.float32)
    flow = jax.random.normal(k2, (B, 2, H, W), jnp.float32) * 2.0
    out = backward_warp(x, flow)
    jax.block_until_ready(out)
    ref = backward_warp_ref(x, flow)
    assert out.shape == (B, C, H, W)
    assert jnp.allclose(out, ref, atol=1e-4, rtol=1e-4), (
        float(jnp.max(jnp.abs(out - ref))))

    # Test 2: force multi dest-tile + multi source-chunk path (accumulator,
    # clamped index_map, range-pruned chunks) on a non-square image.
    B2, C2, H2, W2 = 1, 3, 16, 24
    x2 = jax.random.normal(k3, (B2, C2, H2, W2), jnp.float32)
    flow2 = jax.random.normal(k4, (B2, 2, H2, W2), jnp.float32) * 3.0
    out2 = backward_warp(x2, flow2, tile_t=128, chunk_k=128)
    jax.block_until_ready(out2)
    ref2 = backward_warp_ref(x2, flow2)
    assert out2.shape == (B2, C2, H2, W2)
    assert jnp.allclose(out2, ref2, atol=1e-4, rtol=1e-4), (
        float(jnp.max(jnp.abs(out2 - ref2))))

    print("KERNEL_OK")
</pallas_src>

<mosaic_0001>
module attributes {stable_mosaic.version = 11 : i64} {
  func.func @_backward_warp_kernel(%arg0: i32, %arg1: i32, %arg2: i32, %arg3: memref<4xi32, #tpu.memory_space<smem>>, %arg4: memref<1x4x256xf32, #tpu.memory_space<vmem>>, %arg5: memref<1x2x256xf32, #tpu.memory_space<vmem>>, %arg6: memref<1x4x256xf32, #tpu.memory_space<vmem>>, %arg7: memref<4x256xf32, #tpu.memory_space<vmem>>) attributes {dimension_semantics = [#tpu.dimension_semantics<parallel>, #tpu.dimension_semantics<parallel>, #tpu.dimension_semantics<arbitrary>], iteration_bounds = array<i64: 2, 1, 1>, scalar_prefetch = 1 : i64, scratch_operands = 1 : i64, tpu.core_type = #tpu.core_type<tc>, window_params = [{transform_indices = @transform_0, window_bounds = array<i64: 1, 4, 256>}, {transform_indices = @transform_1, window_bounds = array<i64: 1, 2, 256>}, {transform_indices = @transform_2, window_bounds = array<i64: 1, 4, 256>}]} {
    %c1_i32 = arith.constant 1 : i32
    %0 = arith.muli %arg0, %c1_i32 : i32
    %1 = arith.addi %0, %arg1 : i32
    %c2_i32 = arith.constant 2 : i32
    %2 = arith.muli %1, %c2_i32 : i32
    %3 = arith.index_cast %2 : i32 to index
    %4 = memref.load %arg3[%3] : memref<4xi32, #tpu.memory_space<smem>>
    %c1_i32_0 = arith.constant 1 : i32
    %5 = arith.addi %2, %c1_i32_0 : i32
    %6 = arith.index_cast %5 : i32 to index
    %7 = memref.load %arg3[%6] : memref<4xi32, #tpu.memory_space<smem>>
    %c0_i32 = arith.constant 0 : i32
    %8 = arith.cmpi eq, %arg2, %c0_i32 : i32
    %9 = arith.extui %8 : i1 to i32
    %c0_i32_1 = arith.constant 0 : i32
    %10 = arith.cmpi ne, %9, %c0_i32_1 : i32
    scf.if %10 {
      %cst_24 = arith.constant 0.000000e+00 : f32
      %76 = vector.broadcast %cst_24 : f32 to vector<4x256xf32>
      %c0_25 = arith.constant 0 : index
      %c0_26 = arith.constant 0 : index
      %77 = vector.load %arg7[%c0_25, %c0_26] : memref<4x256xf32, #tpu.memory_space<vmem>>, vector<4x256xf32>
      tpu.vector_store %arg7[%c0_25, %c0_26], %76 {strides = array<i32>} : memref<4x256xf32, #tpu.memory_space<vmem>>, vector<4x256xf32>,
    } else {
    }
    %c0 = arith.constant 0 : index
    %c0_2 = arith.constant 0 : index
    %c0_3 = arith.constant 0 : index
    %11 = vector.load %arg5[%c0, %c0_2, %c0_3] : memref<1x2x256xf32, #tpu.memory_space<vmem>>, vector<1x1x256xf32>
    %12 = vector.shape_cast %11 : vector<1x1x256xf32> to vector<1x256xf32>
    %c0_4 = arith.constant 0 : index
    %c1 = arith.constant 1 : index
    %c0_5 = arith.constant 0 : index
    %13 = vector.load %arg5[%c0_4, %c1, %c0_5] : memref<1x2x256xf32, #tpu.memory_space<vmem>>, vector<1x1x256xf32>
    %14 = vector.shape_cast %13 : vector<1x1x256xf32> to vector<1x256xf32>
    %15 = math.floor %12 : vector<1x256xf32>
    %16 = math.floor %14 : vector<1x256xf32>
    %17 = arith.subf %12, %15 : vector<1x256xf32>
    %cst = arith.constant 1.000000e+00 : f32
    %18 = vector.broadcast %cst : f32 to vector<1x256xf32>
    %19 = arith.subf %18, %17 : vector<1x256xf32>
    %20 = arith.subf %14, %16 : vector<1x256xf32>
    %cst_6 = arith.constant 1.000000e+00 : f32
    %21 = vector.broadcast %cst_6 : f32 to vector<1x256xf32>
    %22 = arith.subf %21, %20 : vector<1x256xf32>
    %23 = arith.fptosi %15 : vector<1x256xf32> to vector<1x256xi32>
    %24 = arith.fptosi %16 : vector<1x256xf32> to vector<1x256xi32>
    %c1_i32_7 = arith.constant 1 : i32
    %25 = vector.broadcast %c1_i32_7 : i32 to vector<1x256xi32>
    %26 = arith.addi %23, %25 : vector<1x256xi32>
    %c1_i32_8 = arith.constant 1 : i32
    %27 = vector.broadcast %c1_i32_8 : i32 to vector<1x256xi32>
    %28 = arith.addi %24, %27 : vector<1x256xi32>
    %c0_i32_9 = arith.constant 0 : i32
    %29 = vector.broadcast %c0_i32_9 : i32 to vector<1x256xi32>
    %30 = arith.cmpi sge, %23, %29 : vector<1x256xi32>
    %c16_i32 = arith.constant 16 : i32
    %31 = vector.broadcast %c16_i32 : i32 to vector<1x256xi32>
    %32 = arith.cmpi slt, %23, %31 : vector<1x256xi32>
    %33 = arith.andi %30, %32 : vector<1x256xi1>
    %c0_i32_10 = arith.constant 0 : i32
    %34 = vector.broadcast %c0_i32_10 : i32 to vector<1x256xi32>
    %35 = arith.cmpi sge, %26, %34 : vector<1x256xi32>
    %c16_i32_11 = arith.constant 16 : i32
    %36 = vector.broadcast %c16_i32_11 : i32 to vector<1x256xi32>
    %37 = arith.cmpi slt, %26, %36 : vector<1x256xi32>
    %38 = arith.andi %35, %37 : vector<1x256xi1>
    %c0_i32_12 = arith.constant 0 : i32
    %39 = vector.broadcast %c0_i32_12 : i32 to vector<1x256xi32>
    %40 = arith.cmpi sge, %24, %39 : vector<1x256xi32>
    %c16_i32_13 = arith.constant 16 : i32
    %41 = vector.broadcast %c16_i32_13 : i32 to vector<1x256xi32>
    %42 = arith.cmpi slt, %24, %41 : vector<1x256xi32>
    %43 = arith.andi %40, %42 : vector<1x256xi1>
    %c0_i32_14 = arith.constant 0 : i32
    %44 = vector.broadcast %c0_i32_14 : i32 to vector<1x256xi32>
    %45 = arith.cmpi sge, %28, %44 : vector<1x256xi32>
    %c16_i32_15 = arith.constant 16 : i32
    %46 = vector.broadcast %c16_i32_15 : i32 to vector<1x256xi32>
    %47 = arith.cmpi slt, %28, %46 : vector<1x256xi32>
    %48 = arith.andi %45, %47 : vector<1x256xi1>
    %49 = arith.andi %33, %43 : vector<1x256xi1>
    %50 = arith.mulf %19, %22 : vector<1x256xf32>
    %cst_16 = arith.constant 0.000000e+00 : f32
    %51 = vector.broadcast %cst_16 : f32 to vector<1x256xf32>
    %52 = arith.select %49, %50, %51 : vector<1x256xi1>, vector<1x256xf32>
    %53 = arith.andi %38, %43 : vector<1x256xi1>
    %54 = arith.mulf %17, %22 : vector<1x256xf32>
    %cst_17 = arith.constant 0.000000e+00 : f32
    %55 = vector.broadcast %cst_17 : f32 to vector<1x256xf32>
    %56 = arith.select %53, %54, %55 : vector<1x256xi1>, vector<1x256xf32>
    %57 = arith.andi %33, %48 : vector<1x256xi1>
    %58 = arith.mulf %19, %20 : vector<1x256xf32>
    %cst_18 = arith.constant 0.000000e+00 : f32
    %59 = vector.broadcast %cst_18 : f32 to vector<1x256xf32>
    %60 = arith.select %57, %58, %59 : vector<1x256xi1>, vector<1x256xf32>
    %61 = arith.andi %38, %48 : vector<1x256xi1>
    %62 = arith.mulf %17, %20 : vector<1x256xf32>
    %cst_19 = arith.constant 0.000000e+00 : f32
    %63 = vector.broadcast %cst_19 : f32 to vector<1x256xf32>
    %64 = arith.select %61, %62, %63 : vector<1x256xi1>, vector<1x256xf32>
    %c16_i32_20 = arith.constant 16 : i32
    %65 = vector.broadcast %c16_i32_20 : i32 to vector<1x256xi32>
    %66 = arith.muli %24, %65 : vector<1x256xi32>
    %67 = arith.addi %66, %23 : vector<1x256xi32>
    %68 = arith.cmpi sge, %arg2, %4 : i32
    %69 = arith.cmpi sle, %arg2, %7 : i32
    %70 = arith.andi %68, %69 : i1
    %71 = arith.extui %70 : i1 to i32
    %c0_i32_21 = arith.constant 0 : i32
    %72 = arith.cmpi ne, %71, %c0_i32_21 : i32
    scf.if %72 {
      %76 = tpu.iota {dimensions = array<i32: 0>} : vector<256x256xi32>
      %c256_i32 = arith.constant 256 : i32
      %77 = arith.muli %arg2, %c256_i32 : i32
      %78 = vector.broadcast %77 : i32 to vector<1x256xi32>
      %79 = arith.subi %67, %78 : vector<1x256xi32>
      %80 = vector.broadcast %79 : vector<1x256xi32> to vector<256x256xi32>
      %81 = arith.subi %76, %80 : vector<256x256xi32>
      %c0_i32_24 = arith.constant 0 : i32
      %82 = vector.broadcast %c0_i32_24 : i32 to vector<256x256xi32>
      %83 = arith.cmpi eq, %81, %82 : vector<256x256xi32>
      %cst_25 = arith.constant 0.000000e+00 : f32
      %84 = vector.shape_cast %52 : vector<1x256xf32> to vector<1x256xf32>
      %85 = vector.broadcast %84 : vector<1x256xf32> to vector<256x256xf32>
      %86 = vector.broadcast %cst_25 : f32 to vector<256x256xf32>
      %87 = arith.select %83, %85, %86 : vector<256x256xi1>, vector<256x256xf32>
      %c1_i32_26 = arith.constant 1 : i32
      %88 = vector.broadcast %c1_i32_26 : i32 to vector<256x256xi32>
      %89 = arith.cmpi eq, %81, %88 : vector<256x256xi32>
      %cst_27 = arith.constant 0.000000e+00 : f32
      %90 = vector.shape_cast %56 : vector<1x256xf32> to vector<1x256xf32>
      %91 = vector.broadcast %90 : vector<1x256xf32> to vector<256x256xf32>
      %92 = vector.broadcast %cst_27 : f32 to vector<256x256xf32>
      %93 = arith.select %89, %91, %92 : vector<256x256xi1>, vector<256x256xf32>
      %94 = arith.addf %87, %93 : vector<256x256xf32>
      %c16_i32_28 = arith.constant 16 : i32
      %95 = vector.broadcast %c16_i32_28 : i32 to vector<256x256xi32>
      %96 = arith.cmpi eq, %81, %95 : vector<256x256xi32>
      %cst_29 = arith.constant 0.000000e+00 : f32
      %97 = vector.shape_cast %60 : vector<1x256xf32> to vector<1x256xf32>
      %98 = vector.broadcast %97 : vector<1x256xf32> to vector<256x256xf32>
      %99 = vector.broadcast %cst_29 : f32 to vector<256x256xf32>
      %100 = arith.select %96, %98, %99 : vector<256x256xi1>, vector<256x256xf32>
      %101 = arith.addf %94, %100 : vector<256x256xf32>
      %c17_i32 = arith.constant 17 : i32
      %102 = vector.broadcast %c17_i32 : i32 to vector<256x256xi32>
      %103 = arith.cmpi eq, %81, %102 : vector<256x256xi32>
      %cst_30 = arith.constant 0.000000e+00 : f32
      %104 = vector.shape_cast %64 : vector<1x256xf32> to vector<1x256xf32>
      %105 = vector.broadcast %104 : vector<1x256xf32> to vector<256x256xf32>
      %106 = vector.broadcast %cst_30 : f32 to vector<256x256xf32>
      %107 = arith.select %103, %105, %106 : vector<256x256xi1>, vector<256x256xf32>
      %108 = arith.addf %101, %107 : vector<256x256xf32>
      %c0_31 = arith.constant 0 : index
      %c0_32 = arith.constant 0 : index
      %109 = vector.load %arg7[%c0_31, %c0_32] : memref<4x256xf32, #tpu.memory_space<vmem>>, vector<4x256xf32>
      %c0_33 = arith.constant 0 : index
      %c0_34 = arith.constant 0 : index
      %c0_35 = arith.constant 0 : index
      %110 = vector.load %arg4[%c0_33, %c0_34, %c0_35] : memref<1x4x256xf32, #tpu.memory_space<vmem>>, vector<1x4x256xf32>
      %111 = vector.shape_cast %110 : vector<1x4x256xf32> to vector<4x256xf32>
      %cst_36 = arith.constant dense<0.000000e+00> : vector<4x256xf32>
      %112 = tpu.matmul %111, %108, %cst_36 {dimension_numbers = #tpu.dot_dimension_numbers<[1], [0], [0], [1], [0, 0, 1, 1], [], []>} : vector<4x256xf32>, vector<256x256xf32>, vector<4x256xf32> -> vector<4x256xf32>
      %113 = arith.addf %109, %112 : vector<4x256xf32>
      %c0_37 = arith.constant 0 : index
      %c0_38 = arith.constant 0 : index
      %114 = vector.load %arg7[%c0_37, %c0_38] : memref<4x256xf32, #tpu.memory_space<vmem>>, vector<4x256xf32>
      tpu.vector_store %arg7[%c0_37, %c0_38], %113 {strides = array<i32>} : memref<4x256xf32, #tpu.memory_space<vmem>>, vector<4x256xf32>,
    } else {
    }
    %c0_i32_22 = arith.constant 0 : i32
    %73 = arith.cmpi eq, %arg2, %c0_i32_22 : i32
    %74 = arith.extui %73 : i1 to i32
    %c0_i32_23 = arith.constant 0 : i32
    %75 = arith.cmpi ne, %74, %c0_i32_23 : i32
    scf.if %75 {
      %76 = arith.addf %52, %56 : vector<1x256xf32>
      %77 = arith.addf %76, %60 : vector<1x256xf32>
      %78 = arith.addf %77, %64 : vector<1x256xf32>
      %cst_24 = arith.constant 9.990000e-01 : f32
      %79 = vector.broadcast %cst_24 : f32 to vector<1x256xf32>
      %80 = arith.cmpf ogt, %78, %79 : vector<1x256xf32>
      %cst_25 = arith.constant 1.000000e+00 : f32
      %cst_26 = arith.constant 0.000000e+00 : f32
      %81 = vector.broadcast %cst_25 : f32 to vector<1x256xf32>
      %82 = vector.broadcast %cst_26 : f32 to vector<1x256xf32>
      %83 = arith.select %80, %81, %82 : vector<1x256xi1>, vector<1x256xf32>
      %c0_27 = arith.constant 0 : index
      %c0_28 = arith.constant 0 : index
      %84 = vector.load %arg7[%c0_27, %c0_28] : memref<4x256xf32, #tpu.memory_space<vmem>>, vector<4x256xf32>
      %85 = vector.broadcast %83 : vector<1x256xf32> to vector<4x256xf32>
      %86 = arith.mulf %84, %85 : vector<4x256xf32>
      %c0_29 = arith.constant 0 : index
      %c0_30 = arith.constant 0 : index
      %c0_31 = arith.constant 0 : index
      %87 = vector.load %arg6[%c0_29, %c0_30, %c0_31] : memref<1x4x256xf32, #tpu.memory_space<vmem>>, vector<1x4x256xf32>
      %88 = vector.shape_cast %87 : vector<1x4x256xf32> to vector<4x256xf32>
      %89 = vector.shape_cast %86 : vector<4x256xf32> to vector<1x4x256xf32>
      tpu.vector_store %arg6[%c0_29, %c0_30, %c0_31], %89 {strides = array<i32>} : memref<1x4x256xf32, #tpu.memory_space<vmem>>, vector<1x4x256xf32>,
    } else {
    }
    return
  }
  func.func @transform_0(%arg0: i32, %arg1: i32, %arg2: i32, %arg3: memref<4xi32, #tpu.memory_space<smem>>) -> (i32, i32, i32) {
    %c1_i32 = arith.constant 1 : i32
    %0 = arith.muli %arg0, %c1_i32 : i32
    %1 = arith.addi %0, %arg1 : i32
    %c2_i32 = arith.constant 2 : i32
    %2 = arith.muli %1, %c2_i32 : i32
    %3 = arith.index_cast %2 : i32 to index
    %4 = memref.load %arg3[%3] : memref<4xi32, #tpu.memory_space<smem>>
    %c1_i32_0 = arith.constant 1 : i32
    %5 = arith.addi %2, %c1_i32_0 : i32
    %6 = arith.index_cast %5 : i32 to index
    %7 = memref.load %arg3[%6] : memref<4xi32, #tpu.memory_space<smem>>
    %8 = arith.maxsi %arg2, %4 : i32
    %9 = arith.minsi %8, %7 : i32
    %c0_i32 = arith.constant 0 : i32
    %c0_i32_1 = arith.constant 0 : i32
    return %arg0, %c0_i32, %9 : i32, i32, i32
  }
  func.func @transform_1(%arg0: i32, %arg1: i32, %arg2: i32, %arg3: memref<4xi32, #tpu.memory_space<smem>>) -> (i32, i32, i32) {
    %c0_i32 = arith.constant 0 : i32
    %c0_i32_0 = arith.constant 0 : i32
    return %arg0, %c0_i32, %arg1 : i32, i32, i32
  }
  func.func @transform_2(%arg0: i32, %arg1: i32, %arg2: i32, %arg3: memref<4xi32, #tpu.memory_space<smem>>) -> (i32, i32, i32) {
    %c0_i32 = arith.constant 0 : i32
    %c0_i32_0 = arith.constant 0 : i32
    return %arg0, %c0_i32, %arg1 : i32, i32, i32
  }
}

</mosaic_0001>

<llo_original>
// kernel: tpu_custom_call.1
$region0: #{tpu_custom_call.1}
  #allocation0 [shape = 'u32[]', space=smem, size = 0x4, offset = 0x4, fixed_abs, tag = 'smem constant byte address 0x4 - core index']
  #allocation1 [shape = 'u32[144,128]{1,0:T(1,128)}', space=vmem, size = 0x12000, scoped, tag = 'internal scratch']
  #allocation2 [shape = 'f32[4,256]{1,0:T(4,128)}', space=vmem, size = 0x1000, scoped, tag = 'scratch operand']
  #allocation3 [shape = 's32[1]{0}', space=sflag, size = 0x4, scoped, tag = 'scoped memory for tpu_custom_call.1']
  #allocation4 [shape = 'u8[512]{0}', space=smem, size = 0x200, scoped, tag = 'prefetched SMEM operand 0']
  %s0 = inlined_call_operand.hbm [shape: s32[4], index: 0, kind: input, shape index: {}]
  %s1 = inlined_call_operand.hbm [shape: f32[2,4,256], index: 1, kind: input, shape index: {}]
  %s2 = inlined_call_operand.hbm [shape: f32[2,2,256], index: 2, kind: input, shape index: {}]
  %s3 = inlined_call_operand.hbm [shape: f32[2,4,256], index: 3, kind: output, shape index: {}]
  %s4 = sld [smem:[#allocation0]]
  $region61: #{tpu_custom_call.1} parent=0
    _
  %s6 = ssub.s32 1, %s4
  %s7 = scalar_select 0, %s6, %s4
  %9 = dma.hbm_to_smem %s0, 16, [#allocation4], [#allocation3]
  %10 = dma.done [#allocation3], 16
  %11 = sfence
  $region1: #{tpu_custom_call.1} parent=0
    #allocation5 [shape = 'u8[8192]{0}', space=vmem, size = 0x2000, scoped, tag = 'input window, operand 1']
    #allocation6 [shape = 's32[2]{0}', space=sflag, size = 0x8, scoped, tag = 'scoped memory for tpu_custom_call.1']
    #allocation7 [shape = 's32[2]{0}', space=sflag, size = 0x8, scoped, tag = 'scoped memory for tpu_custom_call.1']
    #allocation8 [shape = 'u8[4096]{0}', space=vmem, size = 0x1000, scoped, tag = 'input window, operand 2']
    #allocation9 [shape = 's32[2]{0}', space=sflag, size = 0x8, scoped, tag = 'scoped memory for tpu_custom_call.1']
    #allocation10 [shape = 'u8[8192]{0}', space=vmem, size = 0x2000, scoped, tag = 'output window, operand 0']
    %12 = vsyncpa [#allocation6], 0
    %s13 = scalar_lea.sflag [#allocation6], 1
    %14 = vsyncpa %s13, 0
    %15 = vsyncpa [#allocation9], 0
    %s16 = scalar_lea.sflag [#allocation9], 1
    %17 = vsyncpa %s16, 0
    %18 = vsyncpa [#allocation7], 0
    %s19 = scalar_lea.sflag [#allocation7], 1
    %20 = vsyncpa %s19, 0
    loop: start=0, step=1, limit=4
    $region2: #{tpu_custom_call.1} parent=1 // loop_pre_header
      _
    $region3: #{tpu_custom_call.1} parent=1 // loop_header
      %s22 = sphi 0, %s26
      %p23 = scmp.ge.s32.totalorder %s22, 4
      %s29 = sphi 0, %s48
      %s30 = sphi 0, %s44
      %s31 = sphi 0, %s40
      %s32 = sphi 0, %s29
      %s33 = sphi 0, %s30
      %s34 = sphi 0, %s31
      %s35 = sphi 0, %s32
      %s36 = sphi 0, %s33
      %s37 = sphi 0, %s34
      %s71 = sphi 0, %s73
      %s74 = sphi 0, %s71
      %s75 = sphi 0, %s74
      %s91 = sphi 0, %s75
      %s99 = sphi 0, %s101
      %s102 = sphi 0, %s99
      %s103 = sphi 0, %s102
      %s119 = sphi 0, %s103
      %s127 = sphi 0, %s129
      %s130 = sphi 0, %s127
      %s131 = sphi 0, %s130
      %s147 = sphi 0, %s131
    $region4: #{tpu_custom_call.1} parent=1 // loop_header_branch
      %25 = sbr.rel (%p23) target = $region8
    $region5: #{tpu_custom_call.1} parent=1 // loop_body
      %s27 = ssub.s32 %s22, 1
      %s28 = ssub.s32 %s22, 2
      %s38 = sadd.s32 1, %s31
      %p39 = scmp.ge.s32.totalorder %s38, 1
      %s40 = scalar_select %p39, 0, %s38
      %s41 = sadd.s32 1, %s30
      %s42 = scalar_select %p39, %s41, %s30
      %p43 = scmp.ge.s32.totalorder %s42, 1
      %s44 = scalar_select %p43, 0, %s42
      %s45 = sadd.s32 1, %s29
      %s46 = scalar_select %p43, %s45, %s29
      %p47 = scmp.ge.s32.totalorder %s46, 2
      %s48 = scalar_select %p47, 0, %s46
      %s49 = sadd.s32 %s29, %s30
      %s50 = smul.u32 %s49, 2
      %s51 = sld [smem:[#allocation4 + %s50]]
      %s52 = sadd.s32 %s50, 1
      %s53 = sld [smem:[#allocation4 + %s52]]
      %p54 = scmp.gt.s32.totalorder %s31, %s51
      %s55 = scalar_select %p54, %s31, %s51
      %p56 = scmp.lt.s32.totalorder %s55, %s53
      %s57 = scalar_select %p56, %s55, %s53
      %s58 = sadd.s32 %s48, %s44
      %s59 = smul.u32 %s58, 2
      %s60 = sld [smem:[#allocation4 + %s59]]
      %s61 = sadd.s32 %s59, 1
      %s62 = sld [smem:[#allocation4 + %s61]]
      %p63 = scmp.gt.s32.totalorder %s40, %s60
      %s64 = scalar_select %p63, %s40, %s60
      %p65 = scmp.lt.s32.totalorder %s64, %s62
      %s66 = scalar_select %p65, %s64, %s62
      %s67 = ssub.s32 %s29, %s48
      %s68 = ssub.s32 %s57, %s66
      %s69 = sor.u32 %s67, %s68
      %p70 = scmp.eq.s32.totalorder %s69, 0
      %s72 = sadd.s32 %s71, 1
      %s73 = scalar_select %p70, %s71, %s72
      %p76 = pneg %p70
      %p77 = scmp.eq.s32.totalorder %s22, 1
      %p78 = por %p76, %p77
      %p79 = scmp.ne.s32.totalorder %s71, %s74
      %p80 = scmp.eq.s32.totalorder %s22, 0
      %p81 = por %p79, %p80
      %p82 = scmp.ne.s32.totalorder %s71, %s74
      %p83 = scmp.eq.s32.totalorder %s27, 1
      %p84 = por %p82, %p83
      %p85 = scmp.ne.s32.totalorder %s74, %s75
      %p86 = scmp.eq.s32.totalorder %s27, 0
      %p87 = por %p85, %p86
      %p88 = scmp.ne.s32.totalorder %s74, %s75
      %p89 = scmp.eq.s32.totalorder %s28, 1
      %p90 = por %p88, %p89
      %p92 = scmp.ne.s32.totalorder %s75, %s91
      %p93 = scmp.eq.s32.totalorder %s28, 0
      %p94 = por %p92, %p93
      %s95 = ssub.s32 %s29, %s48
      %s96 = ssub.s32 %s30, %s44
      %s97 = sor.u32 %s95, %s96
      %p98 = scmp.eq.s32.totalorder %s97, 0
      %s100 = sadd.s32 %s99, 1
      %s101 = scalar_select %p98, %s99, %s100
      %p104 = pneg %p98
      %p105 = scmp.eq.s32.totalorder %s22, 1
      %p106 = por %p104, %p105
      %p107 = scmp.ne.s32.totalorder %s99, %s102
      %p108 = scmp.eq.s32.totalorder %s22, 0
      %p109 = por %p107, %p108
      %p110 = scmp.ne.s32.totalorder %s99, %s102
      %p111 = scmp.eq.s32.totalorder %s27, 1
      %p112 = por %p110, %p111
      %p113 = scmp.ne.s32.totalorder %s102, %s103
      %p114 = scmp.eq.s32.totalorder %s27, 0
      %p115 = por %p113, %p114
      %p116 = scmp.ne.s32.totalorder %s102, %s103
      %p117 = scmp.eq.s32.totalorder %s28, 1
      %p118 = por %p116, %p117
      %p120 = scmp.ne.s32.totalorder %s103, %s119
      %p121 = scmp.eq.s32.totalorder %s28, 0
      %p122 = por %p120, %p121
      %s123 = ssub.s32 %s29, %s48
      %s124 = ssub.s32 %s30, %s44
      %s125 = sor.u32 %s123, %s124
      %p126 = scmp.eq.s32.totalorder %s125, 0
      %s128 = sadd.s32 %s127, 1
      %s129 = scalar_select %p126, %s127, %s128
      %p132 = pneg %p126
      %p133 = scmp.eq.s32.totalorder %s22, 1
      %p134 = por %p132, %p133
      %p135 = scmp.ne.s32.totalorder %s127, %s130
      %p136 = scmp.eq.s32.totalorder %s22, 0
      %p137 = por %p135, %p136
      %p138 = scmp.ne.s32.totalorder %s127, %s130
      %p139 = scmp.eq.s32.totalorder %s27, 1
      %p140 = por %p138, %p139
      %p141 = scmp.ne.s32.totalorder %s130, %s131
      %p142 = scmp.eq.s32.totalorder %s27, 0
      %p143 = por %p141, %p142
      %p144 = scmp.ne.s32.totalorder %s130, %s131
      %p145 = scmp.eq.s32.totalorder %s28, 1
      %p146 = por %p144, %p145
      %p148 = scmp.ne.s32.totalorder %s131, %s147
      %p149 = scmp.eq.s32.totalorder %s28, 0
      %p150 = por %p148, %p149
      %p151 = scmp.le.s32.totalorder 1, %s22
      %p152 = scmp.lt.s32.totalorder %s22, 3
      %p153 = pnand %p151, %p152
      %p154 = pneg %p153
      // Predicated region
      $region9: #{tpu_custom_call.1} parent=5 // pred_check
        _
      $region10: #{tpu_custom_call.1} parent=5 // pred_check_branch
        %156 = sbr.rel (%p153) target = $region12
      $region11: #{tpu_custom_call.1} parent=5 // pred_region
        %s157 = ssub.s32 %s22, 1
      $region12: #{tpu_custom_call.1} parent=5 // pred_fallthru
        _
      %p158 = scmp.lt.s32.totalorder %s22, 2
      // Predicated region
      $region13: #{tpu_custom_call.1} parent=5 // pred_check
        %p159 = pneg %p158
      $region14: #{tpu_custom_call.1} parent=5 // pred_check_branch
        %161 = sbr.rel (%p159) target = $region16
      $region15: #{tpu_custom_call.1} parent=5 // pred_region
        // Predicated region
        $region17: #{tpu_custom_call.1} parent=15 // pred_check
          %p162 = pneg %p81
        $region18: #{tpu_custom_call.1} parent=15 // pred_check_branch
          %164 = sbr.rel (%p162) target = $region20
        $region19: #{tpu_custom_call.1} parent=15 // pred_region
          %s165 = sand.u32 %s71, 1
          %s166 = scalar_lea.sflag [#allocation6], %s165
          %s167 = sand.u32 %s71, 1
          %s168 = smul.addr %s167, 8
          %s169 = scalar_lea.vmem [#allocation5], %s168
          %s170 = sadd.s32 %s29, %s30
          %s171 = smul.u32 %s170, 2
          %s172 = sld [smem:[#allocation4 + %s171]]
          %s173 = sadd.s32 %s171, 1
          %s174 = sld [smem:[#allocation4 + %s173]]
          %p175 = scmp.gt.s32.totalorder %s31, %s172
          %s176 = scalar_select %p175, %s31, %s172
          %p177 = scmp.lt.s32.totalorder %s176, %s174
          %s178 = scalar_select %p177, %s176, %s174
          %s179 = smul.u32 2, %s178
          %s181 = ssub.s32 128, 128
          %182 = vsyncadd %s166, %s181
          %s183 = smul.addr %s29, 2
          %s184 = sadd.s32 %s179, %s183
          %s185 = smul.addr %s184, 64
          %s186 = scalar_lea.hbm %s1, %s185
          %s188 = sshll.u32 %s169, 4
          %s189 = int_to_ptr.vmem [resolvable:$true] %s188
          %191 = dma.hbm_to_vmem [thread:$0]  %s186, 128, %s189, %s166
        $region20: #{tpu_custom_call.1} parent=15 // pred_fallthru
          _
        // Predicated region
        $region21: #{tpu_custom_call.1} parent=15 // pred_check
          %p192 = pneg %p109
        $region22: #{tpu_custom_call.1} parent=15 // pred_check_branch
          %194 = sbr.rel (%p192) target = $region24
        $region23: #{tpu_custom_call.1} parent=15 // pred_region
          %s195 = sand.u32 %s99, 1
          %s196 = scalar_lea.sflag [#allocation9], %s195
          %s197 = sand.u32 %s99, 1
          %s198 = smul.addr %s197, 4
          %s199 = scalar_lea.vmem [#allocation8], %s198
          %s200 = smul.u32 2, %s30
          %s202 = ssub.s32 64, 64
          %203 = vsyncadd %s196, %s202
          %s204 = smul.addr %s29, 2
          %s205 = sadd.s32 %s200, %s204
          %s206 = smul.addr %s205, 32
          %s207 = scalar_lea.hbm %s2, %s206
          %s209 = sshll.u32 %s199, 4
          %s210 = int_to_ptr.vmem [resolvable:$true] %s209
          %212 = dma.hbm_to_vmem [thread:$0]  %s207, 64, %s210, %s196
        $region24: #{tpu_custom_call.1} parent=15 // pred_fallthru
          _
      $region16: #{tpu_custom_call.1} parent=5 // pred_fallthru
        _
      %p213 = scmp.le.s32.totalorder 1, %s22
      %p214 = scmp.lt.s32.totalorder %s22, 3
      %p215 = pnand %p213, %p214
      %p216 = pneg %p215
      // Predicated region
      $region25: #{tpu_custom_call.1} parent=5 // pred_check
        _
      $region26: #{tpu_custom_call.1} parent=5 // pred_check_branch
        %218 = sbr.rel (%p215) target = $region28
      $region27: #{tpu_custom_call.1} parent=5 // pred_region
        %s219 = ssub.s32 %s22, 1
        %s220 = sand.u32 %s74, 1
        %s221 = scalar_lea.sflag [#allocation6], %s220
        %s222 = sand.u32 %s74, 1
        %s223 = smul.addr %s222, 8
        %s224 = scalar_lea.vmem [#allocation5], %s223
        // Predicated region
        $region29: #{tpu_custom_call.1} parent=27 // pred_check
          %p225 = pneg %p87
        $region30: #{tpu_custom_call.1} parent=27 // pred_check_branch
          %227 = sbr.rel (%p225) target = $region32
        $region31: #{tpu_custom_call.1} parent=27 // pred_region
          %228 = dma.done %s221, 128
        $region32: #{tpu_custom_call.1} parent=27 // pred_fallthru
          _
        %s229 = sand.u32 %s102, 1
        %s230 = scalar_lea.sflag [#allocation9], %s229
        %s231 = sand.u32 %s102, 1
        %s232 = smul.addr %s231, 4
        %s233 = scalar_lea.vmem [#allocation8], %s232
        // Predicated region
        $region33: #{tpu_custom_call.1} parent=27 // pred_check
          %p234 = pneg %p115
        $region34: #{tpu_custom_call.1} parent=27 // pred_check_branch
          %236 = sbr.rel (%p234) target = $region36
        $region35: #{tpu_custom_call.1} parent=27 // pred_region
          %237 = dma.done %s230, 64
        $region36: #{tpu_custom_call.1} parent=27 // pred_fallthru
          _
        %s238 = sand.u32 %s74, 1
        %s239 = scalar_lea.sflag [#allocation6], %s238
        %s240 = sand.u32 %s74, 1
        %s241 = smul.addr %s240, 8
        %s242 = scalar_lea.vmem [#allocation5], %s241
        %p243 = pneg %p87
        %p244 = pneg %p84
        %s245 = sand.u32 %s102, 1
        %s246 = scalar_lea.sflag [#allocation9], %s245
        %s247 = sand.u32 %s102, 1
        %s248 = smul.addr %s247, 4
        %s249 = scalar_lea.vmem [#allocation8], %s248
        %p250 = pneg %p115
        %p251 = pneg %p112
        %p252 = pneg %p143
        %p253 = pneg %p140
        %s254 = sand.u32 %s130, 1
        %s255 = scalar_lea.sflag [#allocation7], %s254
        %s256 = sand.u32 %s130, 1
        %s257 = smul.addr %s256, 8
        %s258 = scalar_lea.vmem [#allocation10], %s257
        %s259 = sadd.s32 %s32, %s33
        %s260 = smul.u32 %s259, 2
        %s261 = sld [smem:[#allocation4 + %s260]]
        %s262 = sadd.s32 %s260, 1
        %s263 = sld [smem:[#allocation4 + %s262]]
        %p264 = scmp.gt.s32.totalorder %s34, %s261
        %s265 = scalar_select %p264, %s34, %s261
        %p266 = scmp.lt.s32.totalorder %s265, %s263
        %s267 = scalar_select %p266, %s265, %s263
        %s268 = smul.u32 2, %s267
        %s269 = smul.u32 2, %s33
        %s270 = smul.u32 2, %s33
        %s271 = sadd.s32 %s32, %s33
        %s272 = smul.u32 %s271, 2
        %s273 = sld [smem:[#allocation4 + %s272]]
        %s274 = sadd.s32 %s272, 1
        %s275 = sld [smem:[#allocation4 + %s274]]
        %p276 = scmp.eq.s32.totalorder %s34, 0
        // Predicated region
        $region37: #{tpu_custom_call.1} parent=27 // pred_check
          %p277 = pneg %p276
        $region38: #{tpu_custom_call.1} parent=27 // pred_check_branch
          %279 = sbr.rel (%p277) target = $region40
        $region39: #{tpu_custom_call.1} parent=27 // pred_region
          %280 = vst [vmem:[#allocation2] sm:$0xff] 0.0
        $region40: #{tpu_custom_call.1} parent=27 // pred_fallthru
          _
        %v281 = vld [vmem:[%s233] ss:$2 sm:$0x3]
        %s282 = scalar_lea.vmem %s233, 1 [#allocation8]
        %v283 = vld [vmem:[%s282] ss:$2 sm:$0x3]
        %v284 = vfloor.f32 %v281
        %v285 = vfloor.f32 %v283
        %v286 = vsub.f32 %v281, %v284
        %v287 = vsub.f32 1.0, %v286
        %v288 = vsub.f32 %v283, %v285
        %v289 = vsub.f32 1.0, %v288
        %v290 = vcvt.f32.s32.to.zero.pseudo %v284
        %v291 = vcvt.f32.s32.to.zero.pseudo %v285
        %v292 = vadd.s32 %v290, 1
        %v293 = vadd.s32 %v291, 1
        %vm294 = vcmp.ge.s32.totalorder %v290, 0
        %vm295 = vcmp.lt.s32.totalorder %v290, 16
        %vm296 = vmand %vm294, %vm295
        %vm297 = vcmp.ge.s32.totalorder %v292, 0
        %vm298 = vcmp.lt.s32.totalorder %v292, 16
        %vm299 = vmand %vm297, %vm298
        %vm300 = vcmp.ge.s32.totalorder %v291, 0
        %vm301 = vcmp.lt.s32.totalorder %v291, 16
        %vm302 = vmand %vm300, %vm301
        %vm303 = vcmp.ge.s32.totalorder %v293, 0
        %vm304 = vcmp.lt.s32.totalorder %v293, 16
        %vm305 = vmand %vm303, %vm304
        %vm306 = vmand %vm296, %vm302
        %v307 = vmul.f32 %v287, %v289
        %v308 = vsel %vm306, %v307, 0.0
        %vm309 = vmand %vm299, %vm302
        %v310 = vmul.f32 %v286, %v289
        %v311 = vsel %vm309, %v310, 0.0
        %vm312 = vmand %vm296, %vm305
        %v313 = vmul.f32 %v287, %v288
        %v314 = vsel %vm312, %v313, 0.0
        %vm315 = vmand %vm299, %vm305
        %v316 = vmul.f32 %v286, %v288
        %v317 = vsel %vm315, %v316, 0.0
        %v318 = vmul.u32 %v291, 16
        %v319 = vadd.s32 %v318, %v290
        %p320 = scmp.ge.s32.totalorder %s34, %s273
        %p321 = scmp.le.s32.totalorder %s34, %s275
        %p322 = pnand %p320, %p321
        %p323 = pneg %p322
        // Predicated region
        $region41: #{tpu_custom_call.1} parent=27 // pred_check
          _
        $region42: #{tpu_custom_call.1} parent=27 // pred_check_branch
          %325 = sbr.rel (%p322) target = $region44
        $region43: #{tpu_custom_call.1} parent=27 // pred_region
          %v326 = vlaneseq
          %v327 = vshrl.u32 %v326, 7
          %v328 = vadd.s32 %v327, 8
          %v329 = vadd.s32 %v327, 16
          %v330 = vadd.s32 %v327, 24
          %v331 = vadd.s32 %v327, 32
          %v332 = vadd.s32 %v327, 40
          %v333 = vadd.s32 %v327, 48
          %v334 = vadd.s32 %v327, 56
          %v335 = vadd.s32 %v327, 64
          %v336 = vadd.s32 %v327, 72
          %v337 = vadd.s32 %v327, 80
          %v338 = vadd.s32 %v327, 88
          %v339 = vadd.s32 %v327, 96
          %v340 = vadd.s32 %v327, 104
          %v341 = vadd.s32 %v327, 112
          %v342 = vadd.s32 %v327, 120
          %v343 = vadd.s32 %v327, 128
          %v344 = vadd.s32 %v327, 136
          %v345 = vadd.s32 %v327, 144
          %v346 = vadd.s32 %v327, 152
          %v347 = vadd.s32 %v327, 160
          %v348 = vadd.s32 %v327, 168
          %v349 = vadd.s32 %v327, 176
          %v350 = vadd.s32 %v327, 184
          %v351 = vadd.s32 %v327, 192
          %v352 = vadd.s32 %v327, 200
          %v353 = vadd.s32 %v327, 208
          %v354 = vadd.s32 %v327, 216
          %v355 = vadd.s32 %v327, 224
          %v356 = vadd.s32 %v327, 232
          %v357 = vadd.s32 %v327, 240
          %v358 = vadd.s32 %v327, 248
          %s359 = smul.u32 %s34, 256
          %v360 = vstv %s359
          %v361 = vsub.s32 %v319, %v360
          %v362 = vlaneseq
          %v363 = vshrl.u32 %v362, 7
          %v364 = vsub.s32 0, %v363
          %v365 = vrot.slane %v361, %v364
          %v366 = vlaneseq
          %v367 = vshrl.u32 %v366, 7
          %v368 = vsub.s32 1, %v367
          %v369 = vrot.slane %v361, %v368
          %v370 = vsub.s32 %v327, %v365
          %v371 = vsub.s32 %v327, %v369
          %v372 = vsub.s32 %v328, %v365
          %v373 = vsub.s32 %v328, %v369
          %v374 = vsub.s32 %v329, %v365
          %v375 = vsub.s32 %v329, %v369
          %v376 = vsub.s32 %v330, %v365
          %v377 = vsub.s32 %v330, %v369
          %v378 = vsub.s32 %v331, %v365
          %v379 = vsub.s32 %v331, %v369
          %v380 = vsub.s32 %v332, %v365
          %v381 = vsub.s32 %v332, %v369
          %v382 = vsub.s32 %v333, %v365
          %v383 = vsub.s32 %v333, %v369
          %v384 = vsub.s32 %v334, %v365
          %v385 = vsub.s32 %v334, %v369
          %v386 = vsub.s32 %v335, %v365
          %v387 = vsub.s32 %v335, %v369
          %v388 = vsub.s32 %v336, %v365
          %v389 = vsub.s32 %v336, %v369
          %v390 = vsub.s32 %v337, %v365
          %v391 = vsub.s32 %v337, %v369
          %v392 = vsub.s32 %v338, %v365
          %v393 = vsub.s32 %v338, %v369
          %v394 = vsub.s32 %v339, %v365
          %v395 = vsub.s32 %v339, %v369
          %v396 = vsub.s32 %v340, %v365
          %v397 = vsub.s32 %v340, %v369
          %v398 = vsub.s32 %v341, %v365
          %v399 = vsub.s32 %v341, %v369
          %v400 = vsub.s32 %v342, %v365
          %v401 = vsub.s32 %v342, %v369
          %v402 = vsub.s32 %v343, %v365
          %v403 = vsub.s32 %v343, %v369
          %v404 = vsub.s32 %v344, %v365
          %v405 = vsub.s32 %v344, %v369
          %v406 = vsub.s32 %v345, %v365
          %v407 = vsub.s32 %v345, %v369
          %v408 = vsub.s32 %v346, %v365
          %v409 = vsub.s32 %v346, %v369
          %v410 = vsub.s32 %v347, %v365
          %v411 = vsub.s32 %v347, %v369
          %v412 = vsub.s32 %v348, %v365
          %v413 = vsub.s32 %v348, %v369
          %v414 = vsub.s32 %v349, %v365
          %v415 = vsub.s32 %v349, %v369
          %v416 = vsub.s32 %v350, %v365
          %v417 = vsub.s32 %v350, %v369
          %v418 = vsub.s32 %v351, %v365
          %v419 = vsub.s32 %v351, %v369
          %v420 = vsub.s32 %v352, %v365
          %v421 = vsub.s32 %v352, %v369
          %v422 = vsub.s32 %v353, %v365
          %v423 = vsub.s32 %v353, %v369
          %v424 = vsub.s32 %v354, %v365
          %v425 = vsub.s32 %v354, %v369
          %v426 = vsub.s32 %v355, %v365
          %v427 = vsub.s32 %v355, %v369
          %v428 = vsub.s32 %v356, %v365
          %v429 = vsub.s32 %v356, %v369
          %v430 = vsub.s32 %v357, %v365
          %v431 = vsub.s32 %v357, %v369
          %v432 = vsub.s32 %v358, %v365
          %v433 = vsub.s32 %v358, %v369
          %vm434 = vcmp.eq.s32.totalorder %v370, 0
          %vm435 = vcmp.eq.s32.totalorder %v371, 0
          %vm436 = vcmp.eq.s32.totalorder %v372, 0
          %vm437 = vcmp.eq.s32.totalorder %v373, 0
          %vm438 = vcmp.eq.s32.totalorder %v374, 0
          %vm439 = vcmp.eq.s32.totalorder %v375, 0
          %vm440 = vcmp.eq.s32.totalorder %v376, 0
          %vm441 = vcmp.eq.s32.totalorder %v377, 0
          %vm442 = vcmp.eq.s32.totalorder %v378, 0
          %vm443 = vcmp.eq.s32.totalorder %v379, 0
          %vm444 = vcmp.eq.s32.totalorder %v380, 0
          %vm445 = vcmp.eq.s32.totalorder %v381, 0
          %vm446 = vcmp.eq.s32.totalorder %v382, 0
          %vm447 = vcmp.eq.s32.totalorder %v383, 0
          %vm448 = vcmp.eq.s32.totalorder %v384, 0
          %vm449 = vcmp.eq.s32.totalorder %v385, 0
          %vm450 = vcmp.eq.s32.totalorder %v386, 0
          %vm451 = vcmp.eq.s32.totalorder %v387, 0
          %vm452 = vcmp.eq.s32.totalorder %v388, 0
          %vm453 = vcmp.eq.s32.totalorder %v389, 0
          %vm454 = vcmp.eq.s32.totalorder %v390, 0
          %vm455 = vcmp.eq.s32.totalorder %v391, 0
          %vm456 = vcmp.eq.s32.totalorder %v392, 0
          %vm457 = vcmp.eq.s32.totalorder %v393, 0
          %vm458 = vcmp.eq.s32.totalorder %v394, 0
          %vm459 = vcmp.eq.s32.totalorder %v395, 0
          %vm460 = vcmp.eq.s32.totalorder %v396, 0
          %vm461 = vcmp.eq.s32.totalorder %v397, 0
          %vm462 = vcmp.eq.s32.totalorder %v398, 0
          %vm463 = vcmp.eq.s32.totalorder %v399, 0
          %vm464 = vcmp.eq.s32.totalorder %v400, 0
          %vm465 = vcmp.eq.s32.totalorder %v401, 0
          %vm466 = vcmp.eq.s32.totalorder %v402, 0
          %vm467 = vcmp.eq.s32.totalorder %v403, 0
          %vm468 = vcmp.eq.s32.totalorder %v404, 0
          %vm469 = vcmp.eq.s32.totalorder %v405, 0
          %vm470 = vcmp.eq.s32.totalorder %v406, 0
          %vm471 = vcmp.eq.s32.totalorder %v407, 0
          %vm472 = vcmp.eq.s32.totalorder %v408, 0
          %vm473 = vcmp.eq.s32.totalorder %v409, 0
          %vm474 = vcmp.eq.s32.totalorder %v410, 0
          %vm475 = vcmp.eq.s32.totalorder %v411, 0
          %vm476 = vcmp.eq.s32.totalorder %v412, 0
          %vm477 = vcmp.eq.s32.totalorder %v413, 0
          %vm478 = vcmp.eq.s32.totalorder %v414, 0
          %vm479 = vcmp.eq.s32.totalorder %v415, 0
          %vm480 = vcmp.eq.s32.totalorder %v416, 0
          %vm481 = vcmp.eq.s32.totalorder %v417, 0
          %vm482 = vcmp.eq.s32.totalorder %v418, 0
          %vm483 = vcmp.eq.s32.totalorder %v419, 0
          %vm484 = vcmp.eq.s32.totalorder %v420, 0
          %vm485 = vcmp.eq.s32.totalorder %v421, 0
          %vm486 = vcmp.eq.s32.totalorder %v422, 0
          %vm487 = vcmp.eq.s32.totalorder %v423, 0
          %vm488 = vcmp.eq.s32.totalorder %v424, 0
          %vm489 = vcmp.eq.s32.totalorder %v425, 0
          %vm490 = vcmp.eq.s32.totalorder %v426, 0
          %vm491 = vcmp.eq.s32.totalorder %v427, 0
          %vm492 = vcmp.eq.s32.totalorder %v428, 0
          %vm493 = vcmp.eq.s32.totalorder %v429, 0
          %vm494 = vcmp.eq.s32.totalorder %v430, 0
          %vm495 = vcmp.eq.s32.totalorder %v431, 0
          %vm496 = vcmp.eq.s32.totalorder %v432, 0
          %vm497 = vcmp.eq.s32.totalorder %v433, 0
          %v499 = vlaneseq
          %v500 = vshrl.u32 %v499, 7
          %v501 = vsub.s32 0, %v500
          %v502 = vrot.slane %v308, %v501
          %v503 = vlaneseq
          %v504 = vshrl.u32 %v503, 7
          %v505 = vsub.s32 1, %v504
          %v506 = vrot.slane %v308, %v505
          %v509 = vsel %vm434, %v502, 0.0
          %v510 = vsel %vm435, %v506, 0.0
          %v511 = vsel %vm436, %v502, 0.0
          %v512 = vsel %vm437, %v506, 0.0
          %v513 = vsel %vm438, %v502, 0.0
          %v514 = vsel %vm439, %v506, 0.0
          %v515 = vsel %vm440, %v502, 0.0
          %v516 = vsel %vm441, %v506, 0.0
          %v517 = vsel %vm442, %v502, 0.0
          %v518 = vsel %vm443, %v506, 0.0
          %v519 = vsel %vm444, %v502, 0.0
          %v520 = vsel %vm445, %v506, 0.0
          %v521 = vsel %vm446, %v502, 0.0
          %v522 = vsel %vm447, %v506, 0.0
          %v523 = vsel %vm448, %v502, 0.0
          %v524 = vsel %vm449, %v506, 0.0
          %v525 = vsel %vm450, %v502, 0.0
          %v526 = vsel %vm451, %v506, 0.0
          %v527 = vsel %vm452, %v502, 0.0
          %v528 = vsel %vm453, %v506, 0.0
          %v529 = vsel %vm454, %v502, 0.0
          %v530 = vsel %vm455, %v506, 0.0
          %v531 = vsel %vm456, %v502, 0.0
          %v532 = vsel %vm457, %v506, 0.0
          %v533 = vsel %vm458, %v502, 0.0
          %v534 = vsel %vm459, %v506, 0.0
          %v535 = vsel %vm460, %v502, 0.0
          %v536 = vsel %vm461, %v506, 0.0
          %v537 = vsel %vm462, %v502, 0.0
          %v538 = vsel %vm463, %v506, 0.0
          %v539 = vsel %vm464, %v502, 0.0
          %v540 = vsel %vm465, %v506, 0.0
          %v541 = vsel %vm466, %v502, 0.0
          %v542 = vsel %vm467, %v506, 0.0
          %v543 = vsel %vm468, %v502, 0.0
          %v544 = vsel %vm469, %v506, 0.0
          %v545 = vsel %vm470, %v502, 0.0
          %v546 = vsel %vm471, %v506, 0.0
          %v547 = vsel %vm472, %v502, 0.0
          %v548 = vsel %vm473, %v506, 0.0
          %v549 = vsel %vm474, %v502, 0.0
          %v550 = vsel %vm475, %v506, 0.0
          %v551 = vsel %vm476, %v502, 0.0
          %v552 = vsel %vm477, %v506, 0.0
          %v553 = vsel %vm478, %v502, 0.0
          %v554 = vsel %vm479, %v506, 0.0
          %v555 = vsel %vm480, %v502, 0.0
          %v556 = vsel %vm481, %v506, 0.0
          %v557 = vsel %vm482, %v502, 0.0
          %v558 = vsel %vm483, %v506, 0.0
          %v559 = vsel %vm484, %v502, 0.0
          %v560 = vsel %vm485, %v506, 0.0
          %v561 = vsel %vm486, %v502, 0.0
          %v562 = vsel %vm487, %v506, 0.0
          %v563 = vsel %vm488, %v502, 0.0
          %v564 = vsel %vm489, %v506, 0.0
          %v565 = vsel %vm490, %v502, 0.0
          %v566 = vsel %vm491, %v506, 0.0
          %v567 = vsel %vm492, %v502, 0.0
          %v568 = vsel %vm493, %v506, 0.0
          %v569 = vsel %vm494, %v502, 0.0
          %v570 = vsel %vm495, %v506, 0.0
          %v571 = vsel %vm496, %v502, 0.0
          %v572 = vsel %vm497, %v506, 0.0
          %vm573 = vcmp.eq.s32.totalorder %v370, 1
          %vm574 = vcmp.eq.s32.totalorder %v371, 1
          %vm575 = vcmp.eq.s32.totalorder %v372, 1
          %vm576 = vcmp.eq.s32.totalorder %v373, 1
          %vm577 = vcmp.eq.s32.totalorder %v374, 1
          %vm578 = vcmp.eq.s32.totalorder %v375, 1
          %vm579 = vcmp.eq.s32.totalorder %v376, 1
          %vm580 = vcmp.eq.s32.totalorder %v377, 1
          %vm581 = vcmp.eq.s32.totalorder %v378, 1
          %vm582 = vcmp.eq.s32.totalorder %v379, 1
          %vm583 = vcmp.eq.s32.totalorder %v380, 1
          %vm584 = vcmp.eq.s32.totalorder %v381, 1
          %vm585 = vcmp.eq.s32.totalorder %v382, 1
          %vm586 = vcmp.eq.s32.totalorder %v383, 1
          %vm587 = vcmp.eq.s32.totalorder %v384, 1
          %vm588 = vcmp.eq.s32.totalorder %v385, 1
          %vm589 = vcmp.eq.s32.totalorder %v386, 1
          %vm590 = vcmp.eq.s32.totalorder %v387, 1
          %vm591 = vcmp.eq.s32.totalorder %v388, 1
          %vm592 = vcmp.eq.s32.totalorder %v389, 1
          %vm593 = vcmp.eq.s32.totalorder %v390, 1
          %vm594 = vcmp.eq.s32.totalorder %v391, 1
          %vm595 = vcmp.eq.s32.totalorder %v392, 1
          %vm596 = vcmp.eq.s32.totalorder %v393, 1
          %vm597 = vcmp.eq.s32.totalorder %v394, 1
          %vm598 = vcmp.eq.s32.totalorder %v395, 1
          %vm599 = vcmp.eq.s32.totalorder %v396, 1
          %vm600 = vcmp.eq.s32.totalorder %v397, 1
          %vm601 = vcmp.eq.s32.totalorder %v398, 1
          %vm602 = vcmp.eq.s32.totalorder %v399, 1
          %vm603 = vcmp.eq.s32.totalorder %v400, 1
          %vm604 = vcmp.eq.s32.totalorder %v401, 1
          %vm605 = vcmp.eq.s32.totalorder %v402, 1
          %vm606 = vcmp.eq.s32.totalorder %v403, 1
          %vm607 = vcmp.eq.s32.totalorder %v404, 1
          %vm608 = vcmp.eq.s32.totalorder %v405, 1
          %vm609 = vcmp.eq.s32.totalorder %v406, 1
          %vm610 = vcmp.eq.s32.totalorder %v407, 1
          %vm611 = vcmp.eq.s32.totalorder %v408, 1
          %vm612 = vcmp.eq.s32.totalorder %v409, 1
          %vm613 = vcmp.eq.s32.totalorder %v410, 1
          %vm614 = vcmp.eq.s32.totalorder %v411, 1
          %vm615 = vcmp.eq.s32.totalorder %v412, 1
          %vm616 = vcmp.eq.s32.totalorder %v413, 1
          %vm617 = vcmp.eq.s32.totalorder %v414, 1
          %vm618 = vcmp.eq.s32.totalorder %v415, 1
          %vm619 = vcmp.eq.s32.totalorder %v416, 1
          %vm620 = vcmp.eq.s32.totalorder %v417, 1
          %vm621 = vcmp.eq.s32.totalorder %v418, 1
          %vm622 = vcmp.eq.s32.totalorder %v419, 1
          %vm623 = vcmp.eq.s32.totalorder %v420, 1
          %vm624 = vcmp.eq.s32.totalorder %v421, 1
          %vm625 = vcmp.eq.s32.totalorder %v422, 1
          %vm626 = vcmp.eq.s32.totalorder %v423, 1
          %vm627 = vcmp.eq.s32.totalorder %v424, 1
          %vm628 = vcmp.eq.s32.totalorder %v425, 1
          %vm629 = vcmp.eq.s32.totalorder %v426, 1
          %vm630 = vcmp.eq.s32.totalorder %v427, 1
          %vm631 = vcmp.eq.s32.totalorder %v428, 1
          %vm632 = vcmp.eq.s32.totalorder %v429, 1
          %vm633 = vcmp.eq.s32.totalorder %v430, 1
          %vm634 = vcmp.eq.s32.totalorder %v431, 1
          %vm635 = vcmp.eq.s32.totalorder %v432, 1
          %vm636 = vcmp.eq.s32.totalorder %v433, 1
          %v638 = vlaneseq
          %v639 = vshrl.u32 %v638, 7
          %v640 = vsub.s32 0, %v639
          %v641 = vrot.slane %v311, %v640
          %v642 = vlaneseq
          %v643 = vshrl.u32 %v642, 7
          %v644 = vsub.s32 1, %v643
          %v645 = vrot.slane %v311, %v644
          %v648 = vsel %vm573, %v641, 0.0
          %v649 = vsel %vm574, %v645, 0.0
          %v650 = vsel %vm575, %v641, 0.0
          %v651 = vsel %vm576, %v645, 0.0
          %v652 = vsel %vm577, %v641, 0.0
          %v653 = vsel %vm578, %v645, 0.0
          %v654 = vsel %vm579, %v641, 0.0
          %v655 = vsel %vm580, %v645, 0.0
          %v656 = vsel %vm581, %v641, 0.0
          %v657 = vsel %vm582, %v645, 0.0
          %v658 = vsel %vm583, %v641, 0.0
          %v659 = vsel %vm584, %v645, 0.0
          %v660 = vsel %vm585, %v641, 0.0
          %v661 = vsel %vm586, %v645, 0.0
          %v662 = vsel %vm587, %v641, 0.0
          %v663 = vsel %vm588, %v645, 0.0
          %v664 = vsel %vm589, %v641, 0.0
          %v665 = vsel %vm590, %v645, 0.0
          %v666 = vsel %vm591, %v641, 0.0
          %v667 = vsel %vm592, %v645, 0.0
          %v668 = vsel %vm593, %v641, 0.0
          %v669 = vsel %vm594, %v645, 0.0
          %v670 = vsel %vm595, %v641, 0.0
          %v671 = vsel %vm596, %v645, 0.0
          %v672 = vsel %vm597, %v641, 0.0
          %v673 = vsel %vm598, %v645, 0.0
          %v674 = vsel %vm599, %v641, 0.0
          %v675 = vsel %vm600, %v645, 0.0
          %v676 = vsel %vm601, %v641, 0.0
          %v677 = vsel %vm602, %v645, 0.0
          %v678 = vsel %vm603, %v641, 0.0
          %v679 = vsel %vm604, %v645, 0.0
          %v680 = vsel %vm605, %v641, 0.0
          %v681 = vsel %vm606, %v645, 0.0
          %v682 = vsel %vm607, %v641, 0.0
          %v683 = vsel %vm608, %v645, 0.0
          %v684 = vsel %vm609, %v641, 0.0
          %v685 = vsel %vm610, %v645, 0.0
          %v686 = vsel %vm611, %v641, 0.0
          %v687 = vsel %vm612, %v645, 0.0
          %v688 = vsel %vm613, %v641, 0.0
          %v689 = vsel %vm614, %v645, 0.0
          %v690 = vsel %vm615, %v641, 0.0
          %v691 = vsel %vm616, %v645, 0.0
          %v692 = vsel %vm617, %v641, 0.0
          %v693 = vsel %vm618, %v645, 0.0
          %v694 = vsel %vm619, %v641, 0.0
          %v695 = vsel %vm620, %v645, 0.0
          %v696 = vsel %vm621, %v641, 0.0
          %v697 = vsel %vm622, %v645, 0.0
          %v698 = vsel %vm623, %v641, 0.0
          %v699 = vsel %vm624, %v645, 0.0
          %v700 = vsel %vm625, %v641, 0.0
          %v701 = vsel %vm626, %v645, 0.0
          %v702 = vsel %vm627, %v641, 0.0
          %v703 = vsel %vm628, %v645, 0.0
          %v704 = vsel %vm629, %v641, 0.0
          %v705 = vsel %vm630, %v645, 0.0
          %v706 = vsel %vm631, %v641, 0.0
          %v707 = vsel %vm632, %v645, 0.0
          %v708 = vsel %vm633, %v641, 0.0
          %v709 = vsel %vm634, %v645, 0.0
          %v710 = vsel %vm635, %v641, 0.0
          %v711 = vsel %vm636, %v645, 0.0
          %v712 = vadd.f32 %v509, %v648
          %v713 = vadd.f32 %v510, %v649
          %v714 = vadd.f32 %v511, %v650
          %v715 = vadd.f32 %v512, %v651
          %v716 = vadd.f32 %v513, %v652
          %v717 = vadd.f32 %v514, %v653
          %v718 = vadd.f32 %v515, %v654
          %v719 = vadd.f32 %v516, %v655
          %v720 = vadd.f32 %v517, %v656
          %v721 = vadd.f32 %v518, %v657
          %v722 = vadd.f32 %v519, %v658
          %v723 = vadd.f32 %v520, %v659
          %v724 = vadd.f32 %v521, %v660
          %v725 = vadd.f32 %v522, %v661
          %v726 = vadd.f32 %v523, %v662
          %v727 = vadd.f32 %v524, %v663
          %v728 = vadd.f32 %v525, %v664
          %v729 = vadd.f32 %v526, %v665
          %v730 = vadd.f32 %v527, %v666
          %v731 = vadd.f32 %v528, %v667
          %v732 = vadd.f32 %v529, %v668
          %v733 = vadd.f32 %v530, %v669
          %v734 = vadd.f32 %v531, %v670
          %v735 = vadd.f32 %v532, %v671
          %v736 = vadd.f32 %v533, %v672
          %v737 = vadd.f32 %v534, %v673
          %v738 = vadd.f32 %v535, %v674
          %v739 = vadd.f32 %v536, %v675
          %v740 = vadd.f32 %v537, %v676
          %v741 = vadd.f32 %v538, %v677
          %v742 = vadd.f32 %v539, %v678
          %v743 = vadd.f32 %v540, %v679
          %v744 = vadd.f32 %v541, %v680
          %v745 = vadd.f32 %v542, %v681
          %v746 = vadd.f32 %v543, %v682
          %v747 = vadd.f32 %v544, %v683
          %v748 = vadd.f32 %v545, %v684
          %v749 = vadd.f32 %v546, %v685
          %v750 = vadd.f32 %v547, %v686
          %v751 = vadd.f32 %v548, %v687
          %v752 = vadd.f32 %v549, %v688
          %v753 = vadd.f32 %v550, %v689
          %v754 = vadd.f32 %v551, %v690
          %v755 = vadd.f32 %v552, %v691
          %v756 = vadd.f32 %v553, %v692
          %v757 = vadd.f32 %v554, %v693
          %v758 = vadd.f32 %v555, %v694
          %v759 = vadd.f32 %v556, %v695
          %v760 = vadd.f32 %v557, %v696
          %v761 = vadd.f32 %v558, %v697
          %v762 = vadd.f32 %v559, %v698
          %v763 = vadd.f32 %v560, %v699
          %v764 = vadd.f32 %v561, %v700
          %v765 = vadd.f32 %v562, %v701
          %v766 = vadd.f32 %v563, %v702
          %v767 = vadd.f32 %v564, %v703
          %v768 = vadd.f32 %v565, %v704
          %v769 = vadd.f32 %v566, %v705
          %v770 = vadd.f32 %v567, %v706
          %v771 = vadd.f32 %v568, %v707
          %v772 = vadd.f32 %v569, %v708
          %v773 = vadd.f32 %v570, %v709
          %v774 = vadd.f32 %v571, %v710
          %v775 = vadd.f32 %v572, %v711
          %vm776 = vcmp.eq.s32.totalorder %v370, 16
          %vm777 = vcmp.eq.s32.totalorder %v371, 16
          %vm778 = vcmp.eq.s32.totalorder %v372, 16
          %vm779 = vcmp.eq.s32.totalorder %v373, 16
          %vm780 = vcmp.eq.s32.totalorder %v374, 16
          %vm781 = vcmp.eq.s32.totalorder %v375, 16
          %vm782 = vcmp.eq.s32.totalorder %v376, 16
          %vm783 = vcmp.eq.s32.totalorder %v377, 16
          %vm784 = vcmp.eq.s32.totalorder %v378, 16
          %vm785 = vcmp.eq.s32.totalorder %v379, 16
          %vm786 = vcmp.eq.s32.totalorder %v380, 16
          %vm787 = vcmp.eq.s32.totalorder %v381, 16
          %vm788 = vcmp.eq.s32.totalorder %v382, 16
          %vm789 = vcmp.eq.s32.totalorder %v383, 16
          %vm790 = vcmp.eq.s32.totalorder %v384, 16
          %vm791 = vcmp.eq.s32.totalorder %v385, 16
          %vm792 = vcmp.eq.s32.totalorder %v386, 16
          %vm793 = vcmp.eq.s32.totalorder %v387, 16
          %vm794 = vcmp.eq.s32.totalorder %v388, 16
          %vm795 = vcmp.eq.s32.totalorder %v389, 16
          %vm796 = vcmp.eq.s32.totalorder %v390, 16
          %vm797 = vcmp.eq.s32.totalorder %v391, 16
          %vm798 = vcmp.eq.s32.totalorder %v392, 16
          %vm799 = vcmp.eq.s32.totalorder %v393, 16
          %vm800 = vcmp.eq.s32.totalorder %v394, 16
          %vm801 = vcmp.eq.s32.totalorder %v395, 16
          %vm802 = vcmp.eq.s32.totalorder %v396, 16
          %vm803 = vcmp.eq.s32.totalorder %v397, 16
          %vm804 = vcmp.eq.s32.totalorder %v398, 16
          %vm805 = vcmp.eq.s32.totalorder %v399, 16
          %vm806 = vcmp.eq.s32.totalorder %v400, 16
          %vm807 = vcmp.eq.s32.totalorder %v401, 16
          %vm808 = vcmp.eq.s32.totalorder %v402, 16
          %vm809 = vcmp.eq.s32.totalorder %v403, 16
          %vm810 = vcmp.eq.s32.totalorder %v404, 16
          %vm811 = vcmp.eq.s32.totalorder %v405, 16
          %vm812 = vcmp.eq.s32.totalorder %v406, 16
          %vm813 = vcmp.eq.s32.totalorder %v407, 16
          %vm814 = vcmp.eq.s32.totalorder %v408, 16
          %vm815 = vcmp.eq.s32.totalorder %v409, 16
          %vm816 = vcmp.eq.s32.totalorder %v410, 16
          %vm817 = vcmp.eq.s32.totalorder %v411, 16
          %vm818 = vcmp.eq.s32.totalorder %v412, 16
          %vm819 = vcmp.eq.s32.totalorder %v413, 16
          %vm820 = vcmp.eq.s32.totalorder %v414, 16
          %vm821 = vcmp.eq.s32.totalorder %v415, 16
          %vm822 = vcmp.eq.s32.totalorder %v416, 16
          %vm823 = vcmp.eq.s32.totalorder %v417, 16
          %vm824 = vcmp.eq.s32.totalorder %v418, 16
          %vm825 = vcmp.eq.s32.totalorder %v419, 16
          %vm826 = vcmp.eq.s32.totalorder %v420, 16
          %vm827 = vcmp.eq.s32.totalorder %v421, 16
          %vm828 = vcmp.eq.s32.totalorder %v422, 16
          %vm829 = vcmp.eq.s32.totalorder %v423, 16
          %vm830 = vcmp.eq.s32.totalorder %v424, 16
          %vm831 = vcmp.eq.s32.totalorder %v425, 16
          %vm832 = vcmp.eq.s32.totalorder %v426, 16
          %vm833 = vcmp.eq.s32.totalorder %v427, 16
          %vm834 = vcmp.eq.s32.totalorder %v428, 16
          %vm835 = vcmp.eq.s32.totalorder %v429, 16
          %vm836 = vcmp.eq.s32.totalorder %v430, 16
          %vm837 = vcmp.eq.s32.totalorder %v431, 16
          %vm838 = vcmp.eq.s32.totalorder %v432, 16
          %vm839 = vcmp.eq.s32.totalorder %v433, 16
          %v841 = vlaneseq
          %v842 = vshrl.u32 %v841, 7
          %v843 = vsub.s32 0, %v842
          %v844 = vrot.slane %v314, %v843
          %v845 = vlaneseq
          %v846 = vshrl.u32 %v845, 7
          %v847 = vsub.s32 1, %v846
          %v848 = vrot.slane %v314, %v847
          %v851 = vsel %vm776, %v844, 0.0
          %v852 = vsel %vm777, %v848, 0.0
          %v853 = vsel %vm778, %v844, 0.0
          %v854 = vsel %vm779, %v848, 0.0
          %v855 = vsel %vm780, %v844, 0.0
          %v856 = vsel %vm781, %v848, 0.0
          %v857 = vsel %vm782, %v844, 0.0
          %v858 = vsel %vm783, %v848, 0.0
          %v859 = vsel %vm784, %v844, 0.0
          %v860 = vsel %vm785, %v848, 0.0
          %v861 = vsel %vm786, %v844, 0.0
          %v862 = vsel %vm787, %v848, 0.0
          %v863 = vsel %vm788, %v844, 0.0
          %v864 = vsel %vm789, %v848, 0.0
          %v865 = vsel %vm790, %v844, 0.0
          %v866 = vsel %vm791, %v848, 0.0
          %v867 = vsel %vm792, %v844, 0.0
          %v868 = vsel %vm793, %v848, 0.0
          %v869 = vsel %vm794, %v844, 0.0
          %v870 = vsel %vm795, %v848, 0.0
          %v871 = vsel %vm796, %v844, 0.0
          %v872 = vsel %vm797, %v848, 0.0
          %v873 = vsel %vm798, %v844, 0.0
          %v874 = vsel %vm799, %v848, 0.0
          %v875 = vsel %vm800, %v844, 0.0
          %v876 = vsel %vm801, %v848, 0.0
          %v877 = vsel %vm802, %v844, 0.0
          %v878 = vsel %vm803, %v848, 0.0
          %v879 = vsel %vm804, %v844, 0.0
          %v880 = vsel %vm805, %v848, 0.0
          %v881 = vsel %vm806, %v844, 0.0
          %v882 = vsel %vm807, %v848, 0.0
          %v883 = vsel %vm808, %v844, 0.0
          %v884 = vsel %vm809, %v848, 0.0
          %v885 = vsel %vm810, %v844, 0.0
          %v886 = vsel %vm811, %v848, 0.0
          %v887 = vsel %vm812, %v844, 0.0
          %v888 = vsel %vm813, %v848, 0.0
          %v889 = vsel %vm814, %v844, 0.0
          %v890 = vsel %vm815, %v848, 0.0
          %v891 = vsel %vm816, %v844, 0.0
          %v892 = vsel %vm817, %v848, 0.0
          %v893 = vsel %vm818, %v844, 0.0
          %v894 = vsel %vm819, %v848, 0.0
          %v895 = vsel %vm820, %v844, 0.0
          %v896 = vsel %vm821, %v848, 0.0
          %v897 = vsel %vm822, %v844, 0.0
          %v898 = vsel %vm823, %v848, 0.0
          %v899 = vsel %vm824, %v844, 0.0
          %v900 = vsel %vm825, %v848, 0.0
          %v901 = vsel %vm826, %v844, 0.0
          %v902 = vsel %vm827, %v848, 0.0
          %v903 = vsel %vm828, %v844, 0.0
          %v904 = vsel %vm829, %v848, 0.0
          %v905 = vsel %vm830, %v844, 0.0
          %v906 = vsel %vm831, %v848, 0.0
          %v907 = vsel %vm832, %v844, 0.0
          %v908 = vsel %vm833, %v848, 0.0
          %v909 = vsel %vm834, %v844, 0.0
          %v910 = vsel %vm835, %v848, 0.0
          %v911 = vsel %vm836, %v844, 0.0
          %v912 = vsel %vm837, %v848, 0.0
          %v913 = vsel %vm838, %v844, 0.0
          %v914 = vsel %vm839, %v848, 0.0
          %v915 = vadd.f32 %v712, %v851
          %v916 = vadd.f32 %v713, %v852
          %v917 = vadd.f32 %v714, %v853
          %v918 = vadd.f32 %v715, %v854
          %v919 = vadd.f32 %v716, %v855
          %v920 = vadd.f32 %v717, %v856
          %v921 = vadd.f32 %v718, %v857
          %v922 = vadd.f32 %v719, %v858
          %v923 = vadd.f32 %v720, %v859
          %v924 = vadd.f32 %v721, %v860
          %v925 = vadd.f32 %v722, %v861
          %v926 = vadd.f32 %v723, %v862
          %v927 = vadd.f32 %v724, %v863
          %v928 = vadd.f32 %v725, %v864
          %v929 = vadd.f32 %v726, %v865
          %v930 = vadd.f32 %v727, %v866
          %v931 = vadd.f32 %v728, %v867
          %v932 = vadd.f32 %v729, %v868
          %v933 = vadd.f32 %v730, %v869
          %v934 = vadd.f32 %v731, %v870
          %v935 = vadd.f32 %v732, %v871
          %v936 = vadd.f32 %v733, %v872
          %v937 = vadd.f32 %v734, %v873
          %v938 = vadd.f32 %v735, %v874
          %v939 = vadd.f32 %v736, %v875
          %v940 = vadd.f32 %v737, %v876
          %v941 = vadd.f32 %v738, %v877
          %v942 = vadd.f32 %v739, %v878
          %v943 = vadd.f32 %v740, %v879
          %v944 = vadd.f32 %v741, %v880
          %v945 = vadd.f32 %v742, %v881
          %v946 = vadd.f32 %v743, %v882
          %v947 = vadd.f32 %v744, %v883
          %v948 = vadd.f32 %v745, %v884
          %v949 = vadd.f32 %v746, %v885
          %v950 = vadd.f32 %v747, %v886
          %v951 = vadd.f32 %v748, %v887
          %v952 = vadd.f32 %v749, %v888
          %v953 = vadd.f32 %v750, %v889
          %v954 = vadd.f32 %v751, %v890
          %v955 = vadd.f32 %v752, %v891
          %v956 = vadd.f32 %v753, %v892
          %v957 = vadd.f32 %v754, %v893
          %v958 = vadd.f32 %v755, %v894
          %v959 = vadd.f32 %v756, %v895
          %v960 = vadd.f32 %v757, %v896
          %v961 = vadd.f32 %v758, %v897
          %v962 = vadd.f32 %v759, %v898
          %v963 = vadd.f32 %v760, %v899
          %v964 = vadd.f32 %v761, %v900
          %v965 = vadd.f32 %v762, %v901
          %v966 = vadd.f32 %v763, %v902
          %v967 = vadd.f32 %v764, %v903
          %v968 = vadd.f32 %v765, %v904
          %v969 = vadd.f32 %v766, %v905
          %v970 = vadd.f32 %v767, %v906
          %v971 = vadd.f32 %v768, %v907
          %v972 = vadd.f32 %v769, %v908
          %v973 = vadd.f32 %v770, %v909
          %v974 = vadd.f32 %v771, %v910
          %v975 = vadd.f32 %v772, %v911
          %v976 = vadd.f32 %v773, %v912
          %v977 = vadd.f32 %v774, %v913
          %v978 = vadd.f32 %v775, %v914
          %vm979 = vcmp.eq.s32.totalorder %v370, 17
          %vm980 = vcmp.eq.s32.totalorder %v371, 17
          %vm981 = vcmp.eq.s32.totalorder %v372, 17
          %vm982 = vcmp.eq.s32.totalorder %v373, 17
          %vm983 = vcmp.eq.s32.totalorder %v374, 17
          %vm984 = vcmp.eq.s32.totalorder %v375, 17
          %vm985 = vcmp.eq.s32.totalorder %v376, 17
          %vm986 = vcmp.eq.s32.totalorder %v377, 17
          %vm987 = vcmp.eq.s32.totalorder %v378, 17
          %vm988 = vcmp.eq.s32.totalorder %v379, 17
          %vm989 = vcmp.eq.s32.totalorder %v380, 17
          %vm990 = vcmp.eq.s32.totalorder %v381, 17
          %vm991 = vcmp.eq.s32.totalorder %v382, 17
          %vm992 = vcmp.eq.s32.totalorder %v383, 17
          %vm993 = vcmp.eq.s32.totalorder %v384, 17
          %vm994 = vcmp.eq.s32.totalorder %v385, 17
          %vm995 = vcmp.eq.s32.totalorder %v386, 17
          %vm996 = vcmp.eq.s32.totalorder %v387, 17
          %vm997 = vcmp.eq.s32.totalorder %v388, 17
          %vm998 = vcmp.eq.s32.totalorder %v389, 17
          %vm999 = vcmp.eq.s32.totalorder %v390, 17
          %vm1000 = vcmp.eq.s32.totalorder %v391, 17
          %vm1001 = vcmp.eq.s32.totalorder %v392, 17
          %vm1002 = vcmp.eq.s32.totalorder %v393, 17
          %vm1003 = vcmp.eq.s32.totalorder %v394, 17
          %vm1004 = vcmp.eq.s32.totalorder %v395, 17
          %vm1005 = vcmp.eq.s32.totalorder %v396, 17
          %vm1006 = vcmp.eq.s32.totalorder %v397, 17
          %vm1007 = vcmp.eq.s32.totalorder %v398, 17
          %vm1008 = vcmp.eq.s32.totalorder %v399, 17
          %vm1009 = vcmp.eq.s32.totalorder %v400, 17
          %vm1010 = vcmp.eq.s32.totalorder %v401, 17
          %vm1011 = vcmp.eq.s32.totalorder %v402, 17
          %vm1012 = vcmp.eq.s32.totalorder %v403, 17
          %vm1013 = vcmp.eq.s32.totalorder %v404, 17
          %vm1014 = vcmp.eq.s32.totalorder %v405, 17
          %vm1015 = vcmp.eq.s32.totalorder %v406, 17
          %vm1016 = vcmp.eq.s32.totalorder %v407, 17
          %vm1017 = vcmp.eq.s32.totalorder %v408, 17
          %vm1018 = vcmp.eq.s32.totalorder %v409, 17
          %vm1019 = vcmp.eq.s32.totalorder %v410, 17
          %vm1020 = vcmp.eq.s32.totalorder %v411, 17
          %vm1021 = vcmp.eq.s32.totalorder %v412, 17
          %vm1022 = vcmp.eq.s32.totalorder %v413, 17
          %vm1023 = vcmp.eq.s32.totalorder %v414, 17
          %vm1024 = vcmp.eq.s32.totalorder %v415, 17
          %vm1025 = vcmp.eq.s32.totalorder %v416, 17
          %vm1026 = vcmp.eq.s32.totalorder %v417, 17
          %vm1027 = vcmp.eq.s32.totalorder %v418, 17
          %vm1028 = vcmp.eq.s32.totalorder %v419, 17
          %vm1029 = vcmp.eq.s32.totalorder %v420, 17
          %vm1030 = vcmp.eq.s32.totalorder %v421, 17
          %vm1031 = vcmp.eq.s32.totalorder %v422, 17
          %vm1032 = vcmp.eq.s32.totalorder %v423, 17
          %vm1033 = vcmp.eq.s32.totalorder %v424, 17
          %vm1034 = vcmp.eq.s32.totalorder %v425, 17
          %vm1035 = vcmp.eq.s32.totalorder %v426, 17
          %vm1036 = vcmp.eq.s32.totalorder %v427, 17
          %vm1037 = vcmp.eq.s32.totalorder %v428, 17
          %vm1038 = vcmp.eq.s32.totalorder %v429, 17
          %vm1039 = vcmp.eq.s32.totalorder %v430, 17
          %vm1040 = vcmp.eq.s32.totalorder %v431, 17
          %vm1041 = vcmp.eq.s32.totalorder %v432, 17
          %vm1042 = vcmp.eq.s32.totalorder %v433, 17
          %v1044 = vlaneseq
          %v1045 = vshrl.u32 %v1044, 7
          %v1046 = vsub.s32 0, %v1045
          %v1047 = vrot.slane %v317, %v1046
          %v1048 = vlaneseq
          %v1049 = vshrl.u32 %v1048, 7
          %v1050 = vsub.s32 1, %v1049
          %v1051 = vrot.slane %v317, %v1050
          %v1054 = vsel %vm979, %v1047, 0.0
          %v1055 = vsel %vm980, %v1051, 0.0
          %v1056 = vsel %vm981, %v1047, 0.0
          %v1057 = vsel %vm982, %v1051, 0.0
          %v1058 = vsel %vm983, %v1047, 0.0
          %v1059 = vsel %vm984, %v1051, 0.0
          %v1060 = vsel %vm985, %v1047, 0.0
          %v1061 = vsel %vm986, %v1051, 0.0
          %v1062 = vsel %vm987, %v1047, 0.0
          %v1063 = vsel %vm988, %v1051, 0.0
          %v1064 = vsel %vm989, %v1047, 0.0
          %v1065 = vsel %vm990, %v1051, 0.0
          %v1066 = vsel %vm991, %v1047, 0.0
          %v1067 = vsel %vm992, %v1051, 0.0
          %v1068 = vsel %vm993, %v1047, 0.0
          %v1069 = vsel %vm994, %v1051, 0.0
          %v1070 = vsel %vm995, %v1047, 0.0
          %v1071 = vsel %vm996, %v1051, 0.0
          %v1072 = vsel %vm997, %v1047, 0.0
          %v1073 = vsel %vm998, %v1051, 0.0
          %v1074 = vsel %vm999, %v1047, 0.0
          %v1075 = vsel %vm1000, %v1051, 0.0
          %v1076 = vsel %vm1001, %v1047, 0.0
          %v1077 = vsel %vm1002, %v1051, 0.0
          %v1078 = vsel %vm1003, %v1047, 0.0
          %v1079 = vsel %vm1004, %v1051, 0.0
          %v1080 = vsel %vm1005, %v1047, 0.0
          %v1081 = vsel %vm1006, %v1051, 0.0
          %v1082 = vsel %vm1007, %v1047, 0.0
          %v1083 = vsel %vm1008, %v1051, 0.0
          %v1084 = vsel %vm1009, %v1047, 0.0
          %v1085 = vsel %vm1010, %v1051, 0.0
          %v1086 = vsel %vm1011, %v1047, 0.0
          %v1087 = vsel %vm1012, %v1051, 0.0
          %v1088 = vsel %vm1013, %v1047, 0.0
          %v1089 = vsel %vm1014, %v1051, 0.0
          %v1090 = vsel %vm1015, %v1047, 0.0
          %v1091 = vsel %vm1016, %v1051, 0.0
          %v1092 = vsel %vm1017, %v1047, 0.0
          %v1093 = vsel %vm1018, %v1051, 0.0
          %v1094 = vsel %vm1019, %v1047, 0.0
          %v1095 = vsel %vm1020, %v1051, 0.0
          %v1096 = vsel %vm1021, %v1047, 0.0
          %v1097 = vsel %vm1022, %v1051, 0.0
          %v1098 = vsel %vm1023, %v1047, 0.0
          %v1099 = vsel %vm1024, %v1051, 0.0
          %v1100 = vsel %vm1025, %v1047, 0.0
          %v1101 = vsel %vm1026, %v1051, 0.0
          %v1102 = vsel %vm1027, %v1047, 0.0
          %v1103 = vsel %vm1028, %v1051, 0.0
          %v1104 = vsel %vm1029, %v1047, 0.0
          %v1105 = vsel %vm1030, %v1051, 0.0
          %v1106 = vsel %vm1031, %v1047, 0.0
          %v1107 = vsel %vm1032, %v1051, 0.0
          %v1108 = vsel %vm1033, %v1047, 0.0
          %v1109 = vsel %vm1034, %v1051, 0.0
          %v1110 = vsel %vm1035, %v1047, 0.0
          %v1111 = vsel %vm1036, %v1051, 0.0
          %v1112 = vsel %vm1037, %v1047, 0.0
          %v1113 = vsel %vm1038, %v1051, 0.0
          %v1114 = vsel %vm1039, %v1047, 0.0
          %v1115 = vsel %vm1040, %v1051, 0.0
          %v1116 = vsel %vm1041, %v1047, 0.0
          %v1117 = vsel %vm1042, %v1051, 0.0
          %v1118 = vadd.f32 %v915, %v1054
          %v1119 = vadd.f32 %v916, %v1055
          %v1120 = vadd.f32 %v917, %v1056
          %v1121 = vadd.f32 %v918, %v1057
          %v1122 = vadd.f32 %v919, %v1058
          %v1123 = vadd.f32 %v920, %v1059
          %v1124 = vadd.f32 %v921, %v1060
          %v1125 = vadd.f32 %v922, %v1061
          %v1126 = vadd.f32 %v923, %v1062
          %v1127 = vadd.f32 %v924, %v1063
          %v1128 = vadd.f32 %v925, %v1064
          %v1129 = vadd.f32 %v926, %v1065
          %v1130 = vadd.f32 %v927, %v1066
          %v1131 = vadd.f32 %v928, %v1067
          %v1132 = vadd.f32 %v929, %v1068
          %v1133 = vadd.f32 %v930, %v1069
          %v1134 = vadd.f32 %v931, %v1070
          %v1135 = vadd.f32 %v932, %v1071
          %v1136 = vadd.f32 %v933, %v1072
          %v1137 = vadd.f32 %v934, %v1073
          %v1138 = vadd.f32 %v935, %v1074
          %v1139 = vadd.f32 %v936, %v1075
          %v1140 = vadd.f32 %v937, %v1076
          %v1141 = vadd.f32 %v938, %v1077
          %v1142 = vadd.f32 %v939, %v1078
          %v1143 = vadd.f32 %v940, %v1079
          %v1144 = vadd.f32 %v941, %v1080
          %v1145 = vadd.f32 %v942, %v1081
          %v1146 = vadd.f32 %v943, %v1082
          %v1147 = vadd.f32 %v944, %v1083
          %v1148 = vadd.f32 %v945, %v1084
          %v1149 = vadd.f32 %v946, %v1085
          %v1150 = vadd.f32 %v947, %v1086
          %v1151 = vadd.f32 %v948, %v1087
          %v1152 = vadd.f32 %v949, %v1088
          %v1153 = vadd.f32 %v950, %v1089
          %v1154 = vadd.f32 %v951, %v1090
          %v1155 = vadd.f32 %v952, %v1091
          %v1156 = vadd.f32 %v953, %v1092
          %v1157 = vadd.f32 %v954, %v1093
          %v1158 = vadd.f32 %v955, %v1094
          %v1159 = vadd.f32 %v956, %v1095
          %v1160 = vadd.f32 %v957, %v1096
          %v1161 = vadd.f32 %v958, %v1097
          %v1162 = vadd.f32 %v959, %v1098
          %v1163 = vadd.f32 %v960, %v1099
          %v1164 = vadd.f32 %v961, %v1100
          %v1165 = vadd.f32 %v962, %v1101
          %v1166 = vadd.f32 %v963, %v1102
          %v1167 = vadd.f32 %v964, %v1103
          %v1168 = vadd.f32 %v965, %v1104
          %v1169 = vadd.f32 %v966, %v1105
          %v1170 = vadd.f32 %v967, %v1106
          %v1171 = vadd.f32 %v968, %v1107
          %v1172 = vadd.f32 %v969, %v1108
          %v1173 = vadd.f32 %v970, %v1109
          %v1174 = vadd.f32 %v971, %v1110
          %v1175 = vadd.f32 %v972, %v1111
          %v1176 = vadd.f32 %v973, %v1112
          %v1177 = vadd.f32 %v974, %v1113
          %v1178 = vadd.f32 %v975, %v1114
          %v1179 = vadd.f32 %v976, %v1115
          %v1180 = vadd.f32 %v977, %v1116
          %v1181 = vadd.f32 %v978, %v1117
          %v1182 = vld [vmem:[#allocation2] sm:$0xff]
          %v1183 = vld [vmem:[%s224] sm:$0xff]
          %v1185 = vcombine.high %v1183, %v1183
          %1187 = vmatprep.subr.mxu0 %v1119
          %1188 = vmatpush1.msra.mxu0 %v1118
          %1189 = vmatprep.subr.mxu0 %v1121
          %1190 = vmatpush1.msra.mxu0 %v1120
          %1191 = vmatprep.subr.mxu0 %v1123
          %1192 = vmatpush1.msra.mxu0 %v1122
          %1193 = vmatprep.subr.mxu0 %v1125
          %1194 = vmatpush1.msra.mxu0 %v1124
          %1195 = vmatprep.subr.mxu0 %v1127
          %1196 = vmatpush1.msra.mxu0 %v1126
          %1197 = vmatprep.subr.mxu0 %v1129
          %1198 = vmatpush1.msra.mxu0 %v1128
          %1199 = vmatprep.subr.mxu0 %v1131
          %1200 = vmatpush1.msra.mxu0 %v1130
          %1201 = vmatprep.subr.mxu0 %v1133
          %1202 = vmatpush1.msra.mxu0 %v1132
          %1203 = vmatprep.subr.mxu0 %v1135
          %1204 = vmatpush1.msra.mxu0 %v1134
          %1205 = vmatprep.subr.mxu0 %v1137
          %1206 = vmatpush1.msra.mxu0 %v1136
          %1207 = vmatprep.subr.mxu0 %v1139
          %1208 = vmatpush1.msra.mxu0 %v1138
          %1209 = vmatprep.subr.mxu0 %v1141
          %1210 = vmatpush1.msra.mxu0 %v1140
          %1211 = vmatprep.subr.mxu0 %v1143
          %1212 = vmatpush1.msra.mxu0 %v1142
          %1213 = vmatprep.subr.mxu0 %v1145
          %1214 = vmatpush1.msra.mxu0 %v1144
          %1215 = vmatprep.subr.mxu0 %v1147
          %1216 = vmatpush1.msra.mxu0 %v1146
          %1217 = vmatprep.subr.mxu0 %v1149
          %1218 = vmatpush1.msra.mxu0 %v1148
          %1219 = vmatprep.subr.mxu0 %v1151
          %1220 = vmatpush1.msra.mxu0 %v1150
          %1221 = vmatprep.subr.mxu0 %v1153
          %1222 = vmatpush1.msra.mxu0 %v1152
          %1223 = vmatprep.subr.mxu0 %v1155
          %1224 = vmatpush1.msra.mxu0 %v1154
          %1225 = vmatprep.subr.mxu0 %v1157
          %1226 = vmatpush1.msra.mxu0 %v1156
          %1227 = vmatprep.subr.mxu0 %v1159
          %1228 = vmatpush1.msra.mxu0 %v1158
          %1229 = vmatprep.subr.mxu0 %v1161
          %1230 = vmatpush1.msra.mxu0 %v1160
          %1231 = vmatprep.subr.mxu0 %v1163
          %1232 = vmatpush1.msra.mxu0 %v1162
          %1233 = vmatprep.subr.mxu0 %v1165
          %1234 = vmatpush1.msra.mxu0 %v1164
          %1235 = vmatprep.subr.mxu0 %v1167
          %1236 = vmatpush1.msra.mxu0 %v1166
          %1237 = vmatprep.subr.mxu0 %v1169
          %1238 = vmatpush1.msra.mxu0 %v1168
          %1239 = vmatprep.subr.mxu0 %v1171
          %1240 = vmatpush1.msra.mxu0 %v1170
          %1241 = vmatprep.subr.mxu0 %v1173
          %1242 = vmatpush1.msra.mxu0 %v1172
          %1243 = vmatprep.subr.mxu0 %v1175
          %1244 = vmatpush1.msra.mxu0 %v1174
          %1245 = vmatprep.subr.mxu0 %v1177
          %1246 = vmatpush1.msra.mxu0 %v1176
          %1247 = vmatprep.subr.mxu0 %v1179
          %1248 = vmatpush1.msra.mxu0 %v1178
          %1249 = vmatprep.subr.mxu0 %v1181
          %1250 = vmatpush1.msra.mxu0 %v1180
          %1251 = vmatprep.mubr.f32.mxu0 %v1185
          %1252 = vmatmul.mubr.f32.gmra.mrb[0].mxu0 %v1183
          %v1253 = vpop.f32.mrb[0].mxu0
          %v1254 = vadd.f32 0.0, %v1253
          %v1255 = vpop.f32.mrb[0].mxu0
          %v1256 = vadd.f32 0.0, %v1255
          %1257 = vdwg.mxu0
          %v1260 = vcombine.low %v1254, %v1256
          %v1262 = vadd.f32 %v1182, %v1260
          %1263 = vst [vmem:[#allocation2] sm:$0xff] %v1262
        $region44: #{tpu_custom_call.1} parent=27 // pred_fallthru
          _
        // Predicated region
        $region45: #{tpu_custom_call.1} parent=27 // pred_check
          %p1264 = pneg %p276
        $region46: #{tpu_custom_call.1} parent=27 // pred_check_branch
          %1266 = sbr.rel (%p1264) target = $region48
        $region47: #{tpu_custom_call.1} parent=27 // pred_region
          %v1267 = vadd.f32 %v308, %v311
          %v1268 = vadd.f32 %v1267, %v314
          %v1269 = vadd.f32 %v1268, %v317
          %vm1270 = vcmp.gt.f32.partialorder %v1269, 0.999
          %v1271 = vsel %vm1270, 1.0, 0.0
          %v1272 = vld [vmem:[#allocation2] sm:$0xff]
          %v1274 = vlaneseq
          %v1275 = vshrl.u32 %v1274, 7
          %v1276 = vsub.s32 0, %v1275
          %v1277 = vrot.slane %v1271, %v1276
          %v1278 = vlaneseq
          %v1279 = vshrl.u32 %v1278, 7
          %v1280 = vsub.s32 1, %v1279
          %v1281 = vrot.slane %v1271, %v1280
          %v1282 = vcombine.low %v1277, %v1281
          %v1284 = vmul.f32 %v1272, %v1282
          %1285 = vst [vmem:[%s258] sm:$0xff] %v1284
        $region48: #{tpu_custom_call.1} parent=27 // pred_fallthru
          _
        %s1286 = sand.u32 %s130, 1
        %s1287 = scalar_lea.sflag [#allocation7], %s1286
        %s1288 = sand.u32 %s130, 1
        %s1289 = smul.addr %s1288, 8
        %s1290 = scalar_lea.vmem [#allocation10], %s1289
        // Predicated region
        $region49: #{tpu_custom_call.1} parent=27 // pred_check
          %p1291 = pneg %p140
        $region50: #{tpu_custom_call.1} parent=27 // pred_check_branch
          %1293 = sbr.rel (%p1291) target = $region52
        $region51: #{tpu_custom_call.1} parent=27 // pred_region
          %s1294 = smul.u32 2, %s33
          %s1296 = ssub.s32 128, 128
          %1297 = vsyncadd %s1287, %s1296
          %s1298 = smul.addr %s32, 2
          %s1299 = sadd.s32 %s1294, %s1298
          %s1300 = smul.addr %s1299, 64
          %s1301 = scalar_lea.hbm %s3, %s1300
          %s1303 = sshll.u32 %s1290, 4
          %s1304 = int_to_ptr.vmem [resolvable:$true] %s1303
          %1306 = dma.vmem_to_hbm [thread:$0]  %s1304, 128, %s1301, %s1287
        $region52: #{tpu_custom_call.1} parent=27 // pred_fallthru
          _
      $region28: #{tpu_custom_call.1} parent=5 // pred_fallthru
        _
      %p1307 = scmp.le.s32.totalorder 2, %s22
      // Predicated region
      $region53: #{tpu_custom_call.1} parent=5 // pred_check
        %p1308 = pneg %p1307
      $region54: #{tpu_custom_call.1} parent=5 // pred_check_branch
        %1310 = sbr.rel (%p1308) target = $region56
      $region55: #{tpu_custom_call.1} parent=5 // pred_region
        %s1311 = ssub.s32 %s22, 2
        // Predicated region
        $region57: #{tpu_custom_call.1} parent=55 // pred_check
          %p1312 = pneg %p146
        $region58: #{tpu_custom_call.1} parent=55 // pred_check_branch
          %1314 = sbr.rel (%p1312) target = $region60
        $region59: #{tpu_custom_call.1} parent=55 // pred_region
          %s1315 = sand.u32 %s131, 1
          %s1316 = scalar_lea.sflag [#allocation7], %s1315
          %s1317 = sand.u32 %s131, 1
          %s1318 = smul.addr %s1317, 8
          %s1319 = scalar_lea.vmem [#allocation10], %s1318
          %1320 = dma.done %s1316, 128
        $region60: #{tpu_custom_call.1} parent=55 // pred_fallthru
          _
      $region56: #{tpu_custom_call.1} parent=5 // pred_fallthru
        _
    $region6: #{tpu_custom_call.1} parent=1 // loop_footer
      %s26 = sadd.s32 1, %s22
    $region7: #{tpu_custom_call.1} parent=1 // loop_footer_branch
      %21 = sbr.rel target = $region3
    $region8: #{tpu_custom_call.1} parent=1 // loop_exit
      _
    %1321 = vsyncpa [#allocation6], 1
    %s1322 = scalar_lea.sflag [#allocation6], 1
    %1323 = vsyncpa %s1322, 1
    %1324 = vsyncpa [#allocation9], 1
    %s1325 = scalar_lea.sflag [#allocation9], 1
    %1326 = vsyncpa %s1325, 1
    %1327 = vsyncpa [#allocation7], 1
    %s1328 = scalar_lea.sflag [#allocation7], 1
    %1329 = vsyncpa %s1328, 1

</llo_original>
